<compile_context>
chip_gen: v7x
topology: tpu7x:2x2x1
jax: 0.10.0
libtpu: 0.0.40
codegen_flags: <defaults>
</compile_context>

<pallas_src>
import inspect

import jax
import jax.numpy as jnp
from jax.experimental import pallas as pl
from jax.experimental.pallas import tpu as pltpu


def _supports_buffered_specs():
    """True if pl.BlockSpec accepts pipeline_mode=pl.Buffered(k)."""
    if not hasattr(pl, "Buffered"):
        return False
    try:
        pl.BlockSpec((8, 128), lambda i: (0, 0), pipeline_mode=pl.Buffered(1))
        return True
    except TypeError:
        return False


_HAS_BUFFERED = _supports_buffered_specs()


def generator_kernel(noise_ref, p_ref,
                     w1_ref, w2_ref, w3_ref, w4_ref,
                     w5_ref, b5_ref,
                     out_ref):
    eps = jnp.float32(1e-5)
    B, N, Z = noise_ref.shape
    x = noise_ref[...].reshape(B * N, Z)                    # bf16 (B*N, z_dim)

    def gen_block(x, w_ref, layer):
        width = w_ref.shape[1]
        # Linear (bias omitted: exactly cancelled by train-mode BatchNorm).
        # bf16 MXU inputs, f32 accumulation.
        y = jnp.dot(x.astype(jnp.bfloat16), w_ref[...],
                    preferred_element_type=jnp.float32)     # (B*N, C)
        # Per-batch BatchNorm1d stats (training mode): one-pass, biased var.
        # NOTE: one-pass E[y^2]-E[y]^2 can cancel for huge means; fine here.
        yb = y.reshape(B, N, width)
        mean = jnp.mean(yb, axis=1, keepdims=True)          # (B, 1, C)
        mean_sq = jnp.mean(yb * yb, axis=1, keepdims=True)
        var = jnp.maximum(mean_sq - mean * mean, 0.0)
        g = p_ref[2 * layer:2 * layer + 1, :width]          # (1, C) gamma
        be = p_ref[2 * layer + 1:2 * layer + 2, :width]     # (1, C) beta
        # Folded affine: y_bn = y * scale + shift.
        scale = g * jax.lax.rsqrt(var + eps)                # (B, 1, C)
        shift = be - mean * scale
        return jnp.maximum(yb * scale + shift, 0.0).reshape(B * N, width)

    x = gen_block(x, w1_ref, 0)
    x = gen_block(x, w2_ref, 1)
    x = gen_block(x, w3_ref, 2)
    x = gen_block(x, w4_ref, 3)

    # Final Linear + Sigmoid (output block is lane-dense, padded to 128).
    y = jnp.dot(x.astype(jnp.bfloat16), w5_ref[...],
                preferred_element_type=jnp.float32) + b5_ref[...]
    out_ref[...] = jax.nn.sigmoid(y).reshape(B, N, -1).astype(out_ref.dtype)


def init_generator_params(key, z_dim, im_dim, hidden_dim=128):
    """PyTorch-like uniform(-1/sqrt(fan_in), 1/sqrt(fan_in)) init; f32 params."""
    dims = [z_dim, hidden_dim, hidden_dim * 2, hidden_dim * 4, hidden_dim * 8, im_dim]
    params = []
    for i in range(5):
        fan_in, fan_out = dims[i], dims[i + 1]
        key, kw, kb = jax.random.split(key, 3)
        bound = 1.0 / jnp.sqrt(jnp.float32(fan_in))
        w = jax.random.uniform(kw, (fan_in, fan_out), jnp.float32, -bound, bound)
        b = jax.random.uniform(kb, (1, fan_out), jnp.float32, -bound, bound)
        if i < 4:
            gamma = jnp.ones((1, fan_out), jnp.float32)     # BN weight init = 1
            beta = jnp.zeros((1, fan_out), jnp.float32)     # BN bias init = 0
            params.append((w, b, gamma, beta))
        else:
            params.append((w, b))
    return params


def generator_forward(noise, params, *, batch_splits=1, out_dtype=jnp.bfloat16):
    """noise: (N, z_dim) or (num_batches, N, z_dim). Returns matching-rank output.

    batch_splits: number of grid steps; 1 (fully collapsed) for v5e/v6e,
    2 on v7x to use both TensorCores ("parallel" grid axis).
    """
    squeeze = noise.ndim == 2
    noise_b = noise[None] if squeeze else noise
    num_batches, N, z_dim = noise_b.shape

    if batch_splits < 1 or num_batches % batch_splits != 0:
        batch_splits = 1
    b_blk = num_batches // batch_splits

    w5, b5 = params[4]
    im_dim = w5.shape[1]
    im_pad = -(-im_dim // 128) * 128

    bn_widths = [w.shape[1] for (w, _b, _g, _be) in params[:4]]
    max_width = max(bn_widths)
    p_width = max(128, -(-max_width // 128) * 128)

    # Coalesced BN affine params: row 2l = gamma_l, row 2l+1 = beta_l, zero pad.
    p_rows = []
    for (_w, _b, g, be) in params[:4]:
        p_rows.append(jnp.pad(g, ((0, 0), (0, p_width - g.shape[1]))))
        p_rows.append(jnp.pad(be, ((0, 0), (0, p_width - be.shape[1]))))
    p_all = jnp.concatenate(p_rows, axis=0).astype(jnp.float32)   # (8, p_width)

    # Pre-transposed (in, out) bf16 weights; linear biases of layers 1-4 are
    # dropped (cancelled by train-mode BN).
    weights = [w.astype(jnp.bfloat16) for (w, _b, _g, _be) in params[:4]]
    w5p = jnp.pad(w5, ((0, 0), (0, im_pad - im_dim))).astype(jnp.bfloat16)
    b5p = jnp.pad(b5, ((0, 0), (0, im_pad - im_dim))).astype(jnp.float32)

    def const_spec(shape):
        idx = lambda *_, _n=len(shape): (0,) * _n
        if _HAS_BUFFERED:
            # Resident weights never rotate -> single-buffer them.
            return pl.BlockSpec(shape, idx, pipeline_mode=pl.Buffered(1))
        return pl.BlockSpec(shape, idx)

    flat_inputs = [noise_b.astype(jnp.bfloat16), p_all, *weights, w5p, b5p]
    in_specs = ([pl.BlockSpec((b_blk, N, z_dim), lambda i: (i, 0, 0)),
                 const_spec(p_all.shape)]
                + [const_spec(w.shape) for w in weights]
                + [const_spec(w5p.shape), const_spec(b5p.shape)])

    out_spec = pl.BlockSpec((b_blk, N, im_pad), lambda i: (i, 0, 0))
    out_shape = jax.ShapeDtypeStruct((num_batches, N, im_pad), out_dtype)

    # Cost estimate (helps XLA overlap surrounding ops with the kernel).
    mm_dims = [tuple(w.shape) for w in weights] + [tuple(w5p.shape)]
    flops = 2 * num_batches * N * sum(si * so for si, so in mm_dims)
    transcendentals = num_batches * (N * im_pad + sum(bn_widths))
    out_itemsize = jnp.dtype(out_dtype).itemsize
    bytes_accessed = (sum(int(a.size) * a.dtype.itemsize for a in flat_inputs)
                      + num_batches * N * im_pad * out_itemsize)
    cost = pl.CostEstimate(flops=int(flops),
                           transcendentals=int(transcendentals),
                           bytes_accessed=int(bytes_accessed))

    # VMEM budget: resident params (single- or double-buffered), double-buffered
    # bf16 noise/out blocks, a few f32 activation slabs of the widest layer,
    # plus headroom; capped by the chip's physical VMEM.
    param_bytes = sum(int(a.size) * a.dtype.itemsize for a in flat_inputs[1:])
    param_bytes *= 1 if _HAS_BUFFERED else 2
    io_bytes = 2 * b_blk * N * (z_dim * 2 + im_pad * out_itemsize)
    act_bytes = 8 * b_blk * N * max_width * 4
    vmem_need = param_bytes + io_bytes + act_bytes + (4 << 20)
    try:
        phys_vmem = int(pltpu.get_tpu_info().vmem_capacity_bytes)
    except Exception:  # conservative fallback (v7x has 64 MiB per TC)
        phys_vmem = 64 << 20
    vmem_limit = int(max(16 << 20, min(vmem_need, (phys_vmem * 3) // 4)))

    out = pl.pallas_call(
        generator_kernel,
        out_shape=out_shape,
        grid=(batch_splits,),
        in_specs=in_specs,
        out_specs=out_spec,
        compiler_params=pltpu.CompilerParams(
            dimension_semantics=("parallel",),
            vmem_limit_bytes=vmem_limit),
        cost_estimate=cost,
    )(*flat_inputs)

    out = out[..., :im_dim]
    return out[0] if squeeze else out


# ----------------------------- references ---------------------------------

def _ref_single_f32(noise, params):
    """Exact PyTorch training-mode math in f32 (with linear bias, two-pass var)."""
    x = noise.astype(jnp.float32)
    eps = 1e-5
    for (w, b, g, be) in params[:4]:
        y = x @ w + b
        mean = jnp.mean(y, axis=0, keepdims=True)
        var = jnp.mean((y - mean) ** 2, axis=0, keepdims=True)
        x = jnp.maximum(g * (y - mean) / jnp.sqrt(var + eps) + be, 0.0)
    w5, b5 = params[4]
    return jax.nn.sigmoid(x @ w5 + b5)


def _ref_single_kernel_math(noise, params):
    """Mirrors the kernel math: bf16 dot inputs, no layer bias (BN cancels it),
    one-pass var, folded affine."""
    x = noise.astype(jnp.bfloat16)
    eps = jnp.float32(1e-5)
    for (w, _b, g, be) in params[:4]:
        y = jnp.dot(x.astype(jnp.bfloat16), w.astype(jnp.bfloat16),
                    preferred_element_type=jnp.float32)
        mean = jnp.mean(y, axis=0, keepdims=True)
        var = jnp.maximum(jnp.mean(y * y, axis=0, keepdims=True) - mean * mean, 0.0)
        scale = g * jax.lax.rsqrt(var + eps)
        shift = be - mean * scale
        x = jnp.maximum(y * scale + shift, 0.0)
    w5, b5 = params[4]
    y = jnp.dot(x.astype(jnp.bfloat16), w5.astype(jnp.bfloat16),
                preferred_element_type=jnp.float32) + b5
    return jax.nn.sigmoid(y)


if __name__ == "__main__":
    # Small shapes consistent with the module: Generator(z_dim=16, im_dim=64, hidden_dim=32)
    z_dim, im_dim, hidden_dim = 16, 64, 32
    num_batches, batch = 4, 8

    key = jax.random.PRNGKey(0)
    key, knoise, kparams = jax.random.split(key, 3)

    noise = jax.random.normal(knoise, (num_batches, batch, z_dim), jnp.float32)
    params = init_generator_params(kparams, z_dim, im_dim, hidden_dim)

    # Fully collapsed grid (one step, all batches) — the v5e/v6e default.
    out = generator_forward(noise, params)
    out = jax.block_until_ready(out)
    assert out.shape == (num_batches, batch, im_dim)
    out_f32 = out.astype(jnp.float32)

    # Primary check: kernel matches its own math (bf16 dots, fused BN, no bias)
    # up to the final bf16 output rounding.
    ref_exact = jax.vmap(lambda n: _ref_single_kernel_math(n, params))(noise)
    assert jnp.allclose(out_f32, ref_exact, atol=1e-2), \
        float(jnp.max(jnp.abs(out_f32 - ref_exact)))

    # Sanity check: close to the full-f32 PyTorch-equivalent forward
    # (which includes the linear biases that train-mode BN cancels).
    ref_f32 = jax.vmap(lambda n: _ref_single_f32(n, params))(noise)
    assert jnp.allclose(out_f32, ref_f32, atol=5e-2)

    # Two-step "parallel" grid (v7x-style, both TensorCores) must agree too.
    out2 = jax.block_until_ready(generator_forward(noise, params, batch_splits=2))
    assert jnp.allclose(out2.astype(jnp.float32), out_f32, atol=1e-2)

    print("KERNEL_OK")
</pallas_src>

<mosaic_0001>
module attributes {stable_mosaic.version = 11 : i64} {
  func.func @generator_kernel(%arg0: i32, %arg1: memref<4x8x16xbf16, #tpu.memory_space<vmem>>, %arg2: memref<8x256xf32, #tpu.memory_space<vmem>>, %arg3: memref<16x32xbf16, #tpu.memory_space<vmem>>, %arg4: memref<32x64xbf16, #tpu.memory_space<vmem>>, %arg5: memref<64x128xbf16, #tpu.memory_space<vmem>>, %arg6: memref<128x256xbf16, #tpu.memory_space<vmem>>, %arg7: memref<256x128xbf16, #tpu.memory_space<vmem>>, %arg8: memref<1x128xf32, #tpu.memory_space<vmem>>, %arg9: memref<4x8x128xbf16, #tpu.memory_space<vmem>>) attributes {dimension_semantics = [#tpu.dimension_semantics<parallel>], iteration_bounds = array<i64: 1>, scalar_prefetch = 0 : i64, scratch_operands = 0 : i64, tpu.core_type = #tpu.core_type<tc>, window_params = [{transform_indices = @transform_0, window_bounds = array<i64: 4, 8, 16>}, {pipeline_mode = #tpu.pipeline_mode<synchronous>, transform_indices = @transform_1, window_bounds = array<i64: 8, 256>}, {pipeline_mode = #tpu.pipeline_mode<synchronous>, transform_indices = @transform_2, window_bounds = array<i64: 16, 32>}, {pipeline_mode = #tpu.pipeline_mode<synchronous>, transform_indices = @transform_3, window_bounds = array<i64: 32, 64>}, {pipeline_mode = #tpu.pipeline_mode<synchronous>, transform_indices = @transform_4, window_bounds = array<i64: 64, 128>}, {pipeline_mode = #tpu.pipeline_mode<synchronous>, transform_indices = @transform_5, window_bounds = array<i64: 128, 256>}, {pipeline_mode = #tpu.pipeline_mode<synchronous>, transform_indices = @transform_6, window_bounds = array<i64: 256, 128>}, {pipeline_mode = #tpu.pipeline_mode<synchronous>, transform_indices = @transform_7, window_bounds = array<i64: 1, 128>}, {transform_indices = @transform_8, window_bounds = array<i64: 4, 8, 128>}]} {
    %c0 = arith.constant 0 : index
    %c0_0 = arith.constant 0 : index
    %c0_1 = arith.constant 0 : index
    %0 = vector.load %arg1[%c0, %c0_0, %c0_1] : memref<4x8x16xbf16, #tpu.memory_space<vmem>>, vector<4x8x16xbf16>
    %1 = vector.shape_cast %0 : vector<4x8x16xbf16> to vector<32x16xbf16>
    %c0_2 = arith.constant 0 : index
    %c0_3 = arith.constant 0 : index
    %2 = vector.load %arg3[%c0_2, %c0_3] : memref<16x32xbf16, #tpu.memory_space<vmem>>, vector<16x32xbf16>
    %cst = arith.constant dense<0.000000e+00> : vector<32x32xf32>
    %3 = tpu.matmul %1, %2, %cst {dimension_numbers = #tpu.dot_dimension_numbers<[1], [0], [0], [1], [0, 0, 1, 1], [], []>} : vector<32x16xbf16>, vector<16x32xbf16>, vector<32x32xf32> -> vector<32x32xf32>
    %4 = vector.shape_cast %3 : vector<32x32xf32> to vector<4x8x32xf32>
    %cst_4 = arith.constant dense<0.000000e+00> : vector<4x32xf32>
    %5 = vector.multi_reduction <add>, %4, %cst_4 [1] : vector<4x8x32xf32> to vector<4x32xf32>
    %6 = vector.shape_cast %5 : vector<4x32xf32> to vector<4x1x32xf32>
    %cst_5 = arith.constant 8.000000e+00 : f32
    %7 = vector.broadcast %cst_5 : f32 to vector<4x1x32xf32>
    %8 = arith.divf %6, %7 : vector<4x1x32xf32>
    %9 = arith.mulf %4, %4 : vector<4x8x32xf32>
    %cst_6 = arith.constant dense<0.000000e+00> : vector<4x32xf32>
    %10 = vector.multi_reduction <add>, %9, %cst_6 [1] : vector<4x8x32xf32> to vector<4x32xf32>
    %11 = vector.shape_cast %10 : vector<4x32xf32> to vector<4x1x32xf32>
    %cst_7 = arith.constant 8.000000e+00 : f32
    %12 = vector.broadcast %cst_7 : f32 to vector<4x1x32xf32>
    %13 = arith.divf %11, %12 : vector<4x1x32xf32>
    %14 = arith.mulf %8, %8 : vector<4x1x32xf32>
    %15 = arith.subf %13, %14 : vector<4x1x32xf32>
    %cst_8 = arith.constant 0.000000e+00 : f32
    %16 = vector.broadcast %cst_8 : f32 to vector<4x1x32xf32>
    %17 = arith.maximumf %15, %16 : vector<4x1x32xf32>
    %c0_9 = arith.constant 0 : index
    %c0_10 = arith.constant 0 : index
    %18 = vector.load %arg2[%c0_9, %c0_10] : memref<8x256xf32, #tpu.memory_space<vmem>>, vector<1x32xf32>
    %c1 = arith.constant 1 : index
    %c0_11 = arith.constant 0 : index
    %19 = vector.load %arg2[%c1, %c0_11] : memref<8x256xf32, #tpu.memory_space<vmem>>, vector<1x32xf32>
    %cst_12 = arith.constant 9.99999974E-6 : f32
    %20 = vector.broadcast %cst_12 : f32 to vector<4x1x32xf32>
    %21 = arith.addf %17, %20 : vector<4x1x32xf32>
    %22 = math.rsqrt %21 : vector<4x1x32xf32>
    %23 = vector.shape_cast %18 : vector<1x32xf32> to vector<1x1x32xf32>
    %24 = vector.broadcast %23 : vector<1x1x32xf32> to vector<4x1x32xf32>
    %25 = arith.mulf %24, %22 : vector<4x1x32xf32>
    %26 = arith.mulf %8, %25 : vector<4x1x32xf32>
    %27 = vector.shape_cast %19 : vector<1x32xf32> to vector<1x1x32xf32>
    %28 = vector.broadcast %27 : vector<1x1x32xf32> to vector<4x1x32xf32>
    %29 = arith.subf %28, %26 : vector<4x1x32xf32>
    %30 = vector.broadcast %25 : vector<4x1x32xf32> to vector<4x8x32xf32>
    %31 = arith.mulf %4, %30 : vector<4x8x32xf32>
    %32 = vector.broadcast %29 : vector<4x1x32xf32> to vector<4x8x32xf32>
    %33 = arith.addf %31, %32 : vector<4x8x32xf32>
    %cst_13 = arith.constant 0.000000e+00 : f32
    %34 = vector.broadcast %cst_13 : f32 to vector<4x8x32xf32>
    %35 = arith.maximumf %33, %34 : vector<4x8x32xf32>
    %36 = vector.shape_cast %35 : vector<4x8x32xf32> to vector<32x32xf32>
    %37 = arith.truncf %36 : vector<32x32xf32> to vector<32x32xbf16>
    %c0_14 = arith.constant 0 : index
    %c0_15 = arith.constant 0 : index
    %38 = vector.load %arg4[%c0_14, %c0_15] : memref<32x64xbf16, #tpu.memory_space<vmem>>, vector<32x64xbf16>
    %cst_16 = arith.constant dense<0.000000e+00> : vector<32x64xf32>
    %39 = tpu.matmul %37, %38, %cst_16 {dimension_numbers = #tpu.dot_dimension_numbers<[1], [0], [0], [1], [0, 0, 1, 1], [], []>} : vector<32x32xbf16>, vector<32x64xbf16>, vector<32x64xf32> -> vector<32x64xf32>
    %40 = vector.shape_cast %39 : vector<32x64xf32> to vector<4x8x64xf32>
    %cst_17 = arith.constant dense<0.000000e+00> : vector<4x64xf32>
    %41 = vector.multi_reduction <add>, %40, %cst_17 [1] : vector<4x8x64xf32> to vector<4x64xf32>
    %42 = vector.shape_cast %41 : vector<4x64xf32> to vector<4x1x64xf32>
    %cst_18 = arith.constant 8.000000e+00 : f32
    %43 = vector.broadcast %cst_18 : f32 to vector<4x1x64xf32>
    %44 = arith.divf %42, %43 : vector<4x1x64xf32>
    %45 = arith.mulf %40, %40 : vector<4x8x64xf32>
    %cst_19 = arith.constant dense<0.000000e+00> : vector<4x64xf32>
    %46 = vector.multi_reduction <add>, %45, %cst_19 [1] : vector<4x8x64xf32> to vector<4x64xf32>
    %47 = vector.shape_cast %46 : vector<4x64xf32> to vector<4x1x64xf32>
    %cst_20 = arith.constant 8.000000e+00 : f32
    %48 = vector.broadcast %cst_20 : f32 to vector<4x1x64xf32>
    %49 = arith.divf %47, %48 : vector<4x1x64xf32>
    %50 = arith.mulf %44, %44 : vector<4x1x64xf32>
    %51 = arith.subf %49, %50 : vector<4x1x64xf32>
    %cst_21 = arith.constant 0.000000e+00 : f32
    %52 = vector.broadcast %cst_21 : f32 to vector<4x1x64xf32>
    %53 = arith.maximumf %51, %52 : vector<4x1x64xf32>
    %c2 = arith.constant 2 : index
    %c0_22 = arith.constant 0 : index
    %54 = vector.load %arg2[%c2, %c0_22] : memref<8x256xf32, #tpu.memory_space<vmem>>, vector<1x64xf32>
    %c3 = arith.constant 3 : index
    %c0_23 = arith.constant 0 : index
    %55 = vector.load %arg2[%c3, %c0_23] : memref<8x256xf32, #tpu.memory_space<vmem>>, vector<1x64xf32>
    %cst_24 = arith.constant 9.99999974E-6 : f32
    %56 = vector.broadcast %cst_24 : f32 to vector<4x1x64xf32>
    %57 = arith.addf %53, %56 : vector<4x1x64xf32>
    %58 = math.rsqrt %57 : vector<4x1x64xf32>
    %59 = vector.shape_cast %54 : vector<1x64xf32> to vector<1x1x64xf32>
    %60 = vector.broadcast %59 : vector<1x1x64xf32> to vector<4x1x64xf32>
    %61 = arith.mulf %60, %58 : vector<4x1x64xf32>
    %62 = arith.mulf %44, %61 : vector<4x1x64xf32>
    %63 = vector.shape_cast %55 : vector<1x64xf32> to vector<1x1x64xf32>
    %64 = vector.broadcast %63 : vector<1x1x64xf32> to vector<4x1x64xf32>
    %65 = arith.subf %64, %62 : vector<4x1x64xf32>
    %66 = vector.broadcast %61 : vector<4x1x64xf32> to vector<4x8x64xf32>
    %67 = arith.mulf %40, %66 : vector<4x8x64xf32>
    %68 = vector.broadcast %65 : vector<4x1x64xf32> to vector<4x8x64xf32>
    %69 = arith.addf %67, %68 : vector<4x8x64xf32>
    %cst_25 = arith.constant 0.000000e+00 : f32
    %70 = vector.broadcast %cst_25 : f32 to vector<4x8x64xf32>
    %71 = arith.maximumf %69, %70 : vector<4x8x64xf32>
    %72 = vector.shape_cast %71 : vector<4x8x64xf32> to vector<32x64xf32>
    %73 = arith.truncf %72 : vector<32x64xf32> to vector<32x64xbf16>
    %c0_26 = arith.constant 0 : index
    %c0_27 = arith.constant 0 : index
    %74 = vector.load %arg5[%c0_26, %c0_27] : memref<64x128xbf16, #tpu.memory_space<vmem>>, vector<64x128xbf16>
    %cst_28 = arith.constant dense<0.000000e+00> : vector<32x128xf32>
    %75 = tpu.matmul %73, %74, %cst_28 {dimension_numbers = #tpu.dot_dimension_numbers<[1], [0], [0], [1], [0, 0, 1, 1], [], []>} : vector<32x64xbf16>, vector<64x128xbf16>, vector<32x128xf32> -> vector<32x128xf32>
    %76 = vector.shape_cast %75 : vector<32x128xf32> to vector<4x8x128xf32>
    %cst_29 = arith.constant dense<0.000000e+00> : vector<4x128xf32>
    %77 = vector.multi_reduction <add>, %76, %cst_29 [1] : vector<4x8x128xf32> to vector<4x128xf32>
    %78 = vector.shape_cast %77 : vector<4x128xf32> to vector<4x1x128xf32>
    %cst_30 = arith.constant 8.000000e+00 : f32
    %79 = vector.broadcast %cst_30 : f32 to vector<4x1x128xf32>
    %80 = arith.divf %78, %79 : vector<4x1x128xf32>
    %81 = arith.mulf %76, %76 : vector<4x8x128xf32>
    %cst_31 = arith.constant dense<0.000000e+00> : vector<4x128xf32>
    %82 = vector.multi_reduction <add>, %81, %cst_31 [1] : vector<4x8x128xf32> to vector<4x128xf32>
    %83 = vector.shape_cast %82 : vector<4x128xf32> to vector<4x1x128xf32>
    %cst_32 = arith.constant 8.000000e+00 : f32
    %84 = vector.broadcast %cst_32 : f32 to vector<4x1x128xf32>
    %85 = arith.divf %83, %84 : vector<4x1x128xf32>
    %86 = arith.mulf %80, %80 : vector<4x1x128xf32>
    %87 = arith.subf %85, %86 : vector<4x1x128xf32>
    %cst_33 = arith.constant 0.000000e+00 : f32
    %88 = vector.broadcast %cst_33 : f32 to vector<4x1x128xf32>
    %89 = arith.maximumf %87, %88 : vector<4x1x128xf32>
    %c4 = arith.constant 4 : index
    %c0_34 = arith.constant 0 : index
    %90 = vector.load %arg2[%c4, %c0_34] : memref<8x256xf32, #tpu.memory_space<vmem>>, vector<1x128xf32>
    %c5 = arith.constant 5 : index
    %c0_35 = arith.constant 0 : index
    %91 = vector.load %arg2[%c5, %c0_35] : memref<8x256xf32, #tpu.memory_space<vmem>>, vector<1x128xf32>
    %cst_36 = arith.constant 9.99999974E-6 : f32
    %92 = vector.broadcast %cst_36 : f32 to vector<4x1x128xf32>
    %93 = arith.addf %89, %92 : vector<4x1x128xf32>
    %94 = math.rsqrt %93 : vector<4x1x128xf32>
    %95 = vector.shape_cast %90 : vector<1x128xf32> to vector<1x1x128xf32>
    %96 = vector.broadcast %95 : vector<1x1x128xf32> to vector<4x1x128xf32>
    %97 = arith.mulf %96, %94 : vector<4x1x128xf32>
    %98 = arith.mulf %80, %97 : vector<4x1x128xf32>
    %99 = vector.shape_cast %91 : vector<1x128xf32> to vector<1x1x128xf32>
    %100 = vector.broadcast %99 : vector<1x1x128xf32> to vector<4x1x128xf32>
    %101 = arith.subf %100, %98 : vector<4x1x128xf32>
    %102 = vector.broadcast %97 : vector<4x1x128xf32> to vector<4x8x128xf32>
    %103 = arith.mulf %76, %102 : vector<4x8x128xf32>
    %104 = vector.broadcast %101 : vector<4x1x128xf32> to vector<4x8x128xf32>
    %105 = arith.addf %103, %104 : vector<4x8x128xf32>
    %cst_37 = arith.constant 0.000000e+00 : f32
    %106 = vector.broadcast %cst_37 : f32 to vector<4x8x128xf32>
    %107 = arith.maximumf %105, %106 : vector<4x8x128xf32>
    %108 = vector.shape_cast %107 : vector<4x8x128xf32> to vector<32x128xf32>
    %109 = arith.truncf %108 : vector<32x128xf32> to vector<32x128xbf16>
    %c0_38 = arith.constant 0 : index
    %c0_39 = arith.constant 0 : index
    %110 = vector.load %arg6[%c0_38, %c0_39] : memref<128x256xbf16, #tpu.memory_space<vmem>>, vector<128x256xbf16>
    %cst_40 = arith.constant dense<0.000000e+00> : vector<32x256xf32>
    %111 = tpu.matmul %109, %110, %cst_40 {dimension_numbers = #tpu.dot_dimension_numbers<[1], [0], [0], [1], [0, 0, 1, 1], [], []>} : vector<32x128xbf16>, vector<128x256xbf16>, vector<32x256xf32> -> vector<32x256xf32>
    %112 = vector.shape_cast %111 : vector<32x256xf32> to vector<4x8x256xf32>
    %cst_41 = arith.constant dense<0.000000e+00> : vector<4x256xf32>
    %113 = vector.multi_reduction <add>, %112, %cst_41 [1] : vector<4x8x256xf32> to vector<4x256xf32>
    %114 = vector.shape_cast %113 : vector<4x256xf32> to vector<4x1x256xf32>
    %cst_42 = arith.constant 8.000000e+00 : f32
    %115 = vector.broadcast %cst_42 : f32 to vector<4x1x256xf32>
    %116 = arith.divf %114, %115 : vector<4x1x256xf32>
    %117 = arith.mulf %112, %112 : vector<4x8x256xf32>
    %cst_43 = arith.constant dense<0.000000e+00> : vector<4x256xf32>
    %118 = vector.multi_reduction <add>, %117, %cst_43 [1] : vector<4x8x256xf32> to vector<4x256xf32>
    %119 = vector.shape_cast %118 : vector<4x256xf32> to vector<4x1x256xf32>
    %cst_44 = arith.constant 8.000000e+00 : f32
    %120 = vector.broadcast %cst_44 : f32 to vector<4x1x256xf32>
    %121 = arith.divf %119, %120 : vector<4x1x256xf32>
    %122 = arith.mulf %116, %116 : vector<4x1x256xf32>
    %123 = arith.subf %121, %122 : vector<4x1x256xf32>
    %cst_45 = arith.constant 0.000000e+00 : f32
    %124 = vector.broadcast %cst_45 : f32 to vector<4x1x256xf32>
    %125 = arith.maximumf %123, %124 : vector<4x1x256xf32>
    %c6 = arith.constant 6 : index
    %c0_46 = arith.constant 0 : index
    %126 = vector.load %arg2[%c6, %c0_46] : memref<8x256xf32, #tpu.memory_space<vmem>>, vector<1x256xf32>
    %c7 = arith.constant 7 : index
    %c0_47 = arith.constant 0 : index
    %127 = vector.load %arg2[%c7, %c0_47] : memref<8x256xf32, #tpu.memory_space<vmem>>, vector<1x256xf32>
    %cst_48 = arith.constant 9.99999974E-6 : f32
    %128 = vector.broadcast %cst_48 : f32 to vector<4x1x256xf32>
    %129 = arith.addf %125, %128 : vector<4x1x256xf32>
    %130 = math.rsqrt %129 : vector<4x1x256xf32>
    %131 = vector.shape_cast %126 : vector<1x256xf32> to vector<1x1x256xf32>
    %132 = vector.broadcast %131 : vector<1x1x256xf32> to vector<4x1x256xf32>
    %133 = arith.mulf %132, %130 : vector<4x1x256xf32>
    %134 = arith.mulf %116, %133 : vector<4x1x256xf32>
    %135 = vector.shape_cast %127 : vector<1x256xf32> to vector<1x1x256xf32>
    %136 = vector.broadcast %135 : vector<1x1x256xf32> to vector<4x1x256xf32>
    %137 = arith.subf %136, %134 : vector<4x1x256xf32>
    %138 = vector.broadcast %133 : vector<4x1x256xf32> to vector<4x8x256xf32>
    %139 = arith.mulf %112, %138 : vector<4x8x256xf32>
    %140 = vector.broadcast %137 : vector<4x1x256xf32> to vector<4x8x256xf32>
    %141 = arith.addf %139, %140 : vector<4x8x256xf32>
    %cst_49 = arith.constant 0.000000e+00 : f32
    %142 = vector.broadcast %cst_49 : f32 to vector<4x8x256xf32>
    %143 = arith.maximumf %141, %142 : vector<4x8x256xf32>
    %144 = vector.shape_cast %143 : vector<4x8x256xf32> to vector<32x256xf32>
    %145 = arith.truncf %144 : vector<32x256xf32> to vector<32x256xbf16>
    %c0_50 = arith.constant 0 : index
    %c0_51 = arith.constant 0 : index
    %146 = vector.load %arg7[%c0_50, %c0_51] : memref<256x128xbf16, #tpu.memory_space<vmem>>, vector<256x128xbf16>
    %cst_52 = arith.constant dense<0.000000e+00> : vector<32x128xf32>
    %147 = tpu.matmul %145, %146, %cst_52 {dimension_numbers = #tpu.dot_dimension_numbers<[1], [0], [0], [1], [0, 0, 1, 1], [], []>} : vector<32x256xbf16>, vector<256x128xbf16>, vector<32x128xf32> -> vector<32x128xf32>
    %c0_53 = arith.constant 0 : index
    %c0_54 = arith.constant 0 : index
    %148 = vector.load %arg8[%c0_53, %c0_54] : memref<1x128xf32, #tpu.memory_space<vmem>>, vector<1x128xf32>
    %149 = vector.broadcast %148 : vector<1x128xf32> to vector<32x128xf32>
    %150 = arith.addf %147, %149 : vector<32x128xf32>
    %151 = arith.negf %150 : vector<32x128xf32>
    %152 = math.exp %151 : vector<32x128xf32>
    %cst_55 = arith.constant 1.000000e+00 : f32
    %153 = vector.broadcast %cst_55 : f32 to vector<32x128xf32>
    %154 = arith.addf %153, %152 : vector<32x128xf32>
    %155 = arith.divf %153, %154 : vector<32x128xf32>
    %156 = vector.shape_cast %155 : vector<32x128xf32> to vector<4x8x128xf32>
    %157 = arith.truncf %156 : vector<4x8x128xf32> to vector<4x8x128xbf16>
    %c0_56 = arith.constant 0 : index
    %c0_57 = arith.constant 0 : index
    %c0_58 = arith.constant 0 : index
    %158 = vector.load %arg9[%c0_56, %c0_57, %c0_58] : memref<4x8x128xbf16, #tpu.memory_space<vmem>>, vector<4x8x128xbf16>
    tpu.vector_store %arg9[%c0_56, %c0_57, %c0_58], %157 {strides = array<i32>} : memref<4x8x128xbf16, #tpu.memory_space<vmem>>, vector<4x8x128xbf16>,
    return
  }
  func.func @transform_0(%arg0: i32) -> (i32, i32, i32) {
    %c0_i32 = arith.constant 0 : i32
    %c0_i32_0 = arith.constant 0 : i32
    %c0_i32_1 = arith.constant 0 : i32
    return %arg0, %c0_i32, %c0_i32_0 : i32, i32, i32
  }
  func.func @transform_1(%arg0: i32) -> (i32, i32) {
    %c0_i32 = arith.constant 0 : i32
    %c0_i32_0 = arith.constant 0 : i32
    %c0_i32_1 = arith.constant 0 : i32
    return %c0_i32, %c0_i32_0 : i32, i32
  }
  func.func @transform_2(%arg0: i32) -> (i32, i32) {
    %c0_i32 = arith.constant 0 : i32
    %c0_i32_0 = arith.constant 0 : i32
    %c0_i32_1 = arith.constant 0 : i32
    return %c0_i32, %c0_i32_0 : i32, i32
  }
  func.func @transform_3(%arg0: i32) -> (i32, i32) {
    %c0_i32 = arith.constant 0 : i32
    %c0_i32_0 = arith.constant 0 : i32
    %c0_i32_1 = arith.constant 0 : i32
    return %c0_i32, %c0_i32_0 : i32, i32
  }
  func.func @transform_4(%arg0: i32) -> (i32, i32) {
    %c0_i32 = arith.constant 0 : i32
    %c0_i32_0 = arith.constant 0 : i32
    %c0_i32_1 = arith.constant 0 : i32
    return %c0_i32, %c0_i32_0 : i32, i32
  }
  func.func @transform_5(%arg0: i32) -> (i32, i32) {
    %c0_i32 = arith.constant 0 : i32
    %c0_i32_0 = arith.constant 0 : i32
    %c0_i32_1 = arith.constant 0 : i32
    return %c0_i32, %c0_i32_0 : i32, i32
  }
  func.func @transform_6(%arg0: i32) -> (i32, i32) {
    %c0_i32 = arith.constant 0 : i32
    %c0_i32_0 = arith.constant 0 : i32
    %c0_i32_1 = arith.constant 0 : i32
    return %c0_i32, %c0_i32_0 : i32, i32
  }
  func.func @transform_7(%arg0: i32) -> (i32, i32) {
    %c0_i32 = arith.constant 0 : i32
    %c0_i32_0 = arith.constant 0 : i32
    %c0_i32_1 = arith.constant 0 : i32
    return %c0_i32, %c0_i32_0 : i32, i32
  }
  func.func @transform_8(%arg0: i32) -> (i32, i32, i32) {
    %c0_i32 = arith.constant 0 : i32
    %c0_i32_0 = arith.constant 0 : i32
    %c0_i32_1 = arith.constant 0 : i32
    return %arg0, %c0_i32, %c0_i32_0 : i32, i32, i32
  }
}

</mosaic_0001>

<llo_original>
// kernel: tpu_custom_call.1
$region0: #{tpu_custom_call.1}
  #allocation0 [shape = 'u32[]', space=smem, size = 0x4, offset = 0x4, fixed_abs, tag = 'smem constant byte address 0x4 - core index']
  #allocation1 [shape = 'u32[144,128]{1,0:T(1,128)}', space=vmem, size = 0x12000, scoped, tag = 'internal scratch']
  %s0 = inlined_call_operand.hbm [shape: bf16[4,8,16], index: 0, kind: input, shape index: {}]
  %s1 = inlined_call_operand.hbm [shape: f32[8,256], index: 1, kind: input, shape index: {}]
  %s2 = inlined_call_operand.hbm [shape: bf16[16,32], index: 2, kind: input, shape index: {}]
  %s3 = inlined_call_operand.hbm [shape: bf16[32,64], index: 3, kind: input, shape index: {}]
  %s4 = inlined_call_operand.hbm [shape: bf16[64,128], index: 4, kind: input, shape index: {}]
  %s5 = inlined_call_operand.hbm [shape: bf16[128,256], index: 5, kind: input, shape index: {}]
  %s6 = inlined_call_operand.hbm [shape: bf16[256,128], index: 6, kind: input, shape index: {}]
  %s7 = inlined_call_operand.vmem [shape: f32[1,128], index: 7, kind: input, shape index: {}]
  %s8 = inlined_call_operand.hbm [shape: bf16[4,8,128], index: 8, kind: output, shape index: {}]
  %s9 = sld [smem:[#allocation0]]
  $region70: #{tpu_custom_call.1} parent=0
    _
  %s11 = ssub.s32 1, %s9
  %s12 = scalar_select 0, %s11, %s9
  $region1: #{tpu_custom_call.1} parent=0
    #allocation2 [shape = 'u8[8192]{0}', space=vmem, size = 0x2000, scoped, tag = 'input window, operand 0, single buffered']
    #allocation3 [shape = 's32[1]{0}', space=sflag, size = 0x4, scoped, tag = 'scoped memory for tpu_custom_call.1']
    #allocation4 [shape = 's32[1]{0}', space=sflag, size = 0x4, scoped, tag = 'scoped memory for tpu_custom_call.1']
    #allocation5 [shape = 'u8[8192]{0}', space=vmem, size = 0x2000, scoped, tag = 'input window, operand 1, single buffered']
    #allocation6 [shape = 's32[1]{0}', space=sflag, size = 0x4, scoped, tag = 'scoped memory for tpu_custom_call.1']
    #allocation7 [shape = 'u8[4096]{0}', space=vmem, size = 0x1000, scoped, tag = 'input window, operand 2, single buffered']
    #allocation8 [shape = 'u8[8192]{0}', space=vmem, size = 0x2000, scoped, tag = 'input window, operand 3, single buffered']
    #allocation9 [shape = 's32[1]{0}', space=sflag, size = 0x4, scoped, tag = 'scoped memory for tpu_custom_call.1']
    #allocation10 [shape = 'u8[16384]{0}', space=vmem, size = 0x4000, scoped, tag = 'input window, operand 4, single buffered']
    #allocation11 [shape = 'u8[65536]{0}', space=vmem, size = 0x10000, scoped, tag = 'input window, operand 5, single buffered']
    #allocation12 [shape = 's32[1]{0}', space=sflag, size = 0x4, scoped, tag = 'scoped memory for tpu_custom_call.1']
    #allocation13 [shape = 'u8[65536]{0}', space=vmem, size = 0x10000, scoped, tag = 'input window, operand 6, single buffered']
    #allocation14 [shape = 'u8[8192]{0}', space=vmem, size = 0x2000, scoped, tag = 'output window, operand 0, single buffered']
    %13 = vsyncpa [#allocation3], 0
    %14 = vsyncpa [#allocation6], 0
    %15 = vsyncpa [#allocation9], 0
    %16 = vsyncpa [#allocation12], 0
    %17 = vsyncpa [#allocation4], 0
    // Predicated region
    $region2: #{tpu_custom_call.1} parent=1 // pred_check
      _
    $region3: #{tpu_custom_call.1} parent=1 // pred_check_branch
      %19 = sbr.rel (0) target = $region5
    $region4: #{tpu_custom_call.1} parent=1 // pred_region
      %s21 = ssub.s32 256, 256
      %22 = vsyncadd [#allocation3], %s21
      %s23 = sshll.u32 [#allocation2], 4
      %s24 = int_to_ptr.vmem [resolvable:$true] %s23
      %29 = dma.hbm_to_vmem [thread:$0]  %s0, 256, %s24, [#allocation3], 64, 64, 4
    $region5: #{tpu_custom_call.1} parent=1 // pred_fallthru
      _
    // Predicated region
    $region6: #{tpu_custom_call.1} parent=1 // pred_check
      _
    $region7: #{tpu_custom_call.1} parent=1 // pred_check_branch
      %31 = sbr.rel (0) target = $region9
    $region8: #{tpu_custom_call.1} parent=1 // pred_region
      %s33 = ssub.s32 256, 256
      %34 = vsyncadd [#allocation6], %s33
      %s36 = sshll.u32 [#allocation5], 4
      %s37 = int_to_ptr.vmem [resolvable:$true] %s36
      %39 = dma.hbm_to_vmem [thread:$0]  %s1, 256, %s37, [#allocation6]
    $region9: #{tpu_custom_call.1} parent=1 // pred_fallthru
      _
    // Predicated region
    $region10: #{tpu_custom_call.1} parent=1 // pred_check
      _
    $region11: #{tpu_custom_call.1} parent=1 // pred_check_branch
      %41 = sbr.rel (0) target = $region13
    $region12: #{tpu_custom_call.1} parent=1 // pred_region
      %s43 = ssub.s32 128, 128
      %44 = vsyncadd [#allocation6], %s43
      %s45 = sshll.u32 [#allocation7], 4
      %s46 = int_to_ptr.vmem [resolvable:$true] %s45
      %51 = dma.hbm_to_vmem [thread:$0]  %s2, 128, %s46, [#allocation6], 64, 64, 4
    $region13: #{tpu_custom_call.1} parent=1 // pred_fallthru
      _
    // Predicated region
    $region14: #{tpu_custom_call.1} parent=1 // pred_check
      _
    $region15: #{tpu_custom_call.1} parent=1 // pred_check_branch
      %53 = sbr.rel (0) target = $region17
    $region16: #{tpu_custom_call.1} parent=1 // pred_region
      %s55 = ssub.s32 256, 256
      %56 = vsyncadd [#allocation9], %s55
      %s57 = sshll.u32 [#allocation8], 4
      %s58 = int_to_ptr.vmem [resolvable:$true] %s57
      %63 = dma.hbm_to_vmem [thread:$0]  %s3, 256, %s58, [#allocation9], 64, 64, 4
    $region17: #{tpu_custom_call.1} parent=1 // pred_fallthru
      _
    // Predicated region
    $region18: #{tpu_custom_call.1} parent=1 // pred_check
      _
    $region19: #{tpu_custom_call.1} parent=1 // pred_check_branch
      %65 = sbr.rel (0) target = $region21
    $region20: #{tpu_custom_call.1} parent=1 // pred_region
      %s67 = ssub.s32 512, 512
      %68 = vsyncadd [#allocation9], %s67
      %s69 = sshll.u32 [#allocation10], 4
      %s70 = int_to_ptr.vmem [resolvable:$true] %s69
      %75 = dma.hbm_to_vmem [thread:$0]  %s4, 512, %s70, [#allocation9], 64, 64, 4
    $region21: #{tpu_custom_call.1} parent=1 // pred_fallthru
      _
    // Predicated region
    $region22: #{tpu_custom_call.1} parent=1 // pred_check
      _
    $region23: #{tpu_custom_call.1} parent=1 // pred_check_branch
      %77 = sbr.rel (0) target = $region25
    $region24: #{tpu_custom_call.1} parent=1 // pred_region
      %s79 = ssub.s32 2048, 2048
      %80 = vsyncadd [#allocation12], %s79
      %s81 = sshll.u32 [#allocation11], 4
      %s82 = int_to_ptr.vmem [resolvable:$true] %s81
      %87 = dma.hbm_to_vmem [thread:$0]  %s5, 2048, %s82, [#allocation12], 128, 128, 8
    $region25: #{tpu_custom_call.1} parent=1 // pred_fallthru
      _
    // Predicated region
    $region26: #{tpu_custom_call.1} parent=1 // pred_check
      _
    $region27: #{tpu_custom_call.1} parent=1 // pred_check_branch
      %89 = sbr.rel (0) target = $region29
    $region28: #{tpu_custom_call.1} parent=1 // pred_region
      %s91 = ssub.s32 2048, 2048
      %92 = vsyncadd [#allocation12], %s91
      %s93 = sshll.u32 [#allocation13], 4
      %s94 = int_to_ptr.vmem [resolvable:$true] %s93
      %99 = dma.hbm_to_vmem [thread:$0]  %s6, 2048, %s94, [#allocation12], 64, 64, 4
    $region29: #{tpu_custom_call.1} parent=1 // pred_fallthru
      _
    // Predicated region
    $region30: #{tpu_custom_call.1} parent=1 // pred_check
      _
    $region31: #{tpu_custom_call.1} parent=1 // pred_check_branch
      %101 = sbr.rel (0) target = $region33
    $region32: #{tpu_custom_call.1} parent=1 // pred_region
      _
    $region33: #{tpu_custom_call.1} parent=1 // pred_fallthru
      _
    // Predicated region
    $region34: #{tpu_custom_call.1} parent=1 // pred_check
      _
    $region35: #{tpu_custom_call.1} parent=1 // pred_check_branch
      %103 = sbr.rel (0) target = $region37
    $region36: #{tpu_custom_call.1} parent=1 // pred_region
      %104 = dma.done [#allocation3], 256
    $region37: #{tpu_custom_call.1} parent=1 // pred_fallthru
      _
    // Predicated region
    $region38: #{tpu_custom_call.1} parent=1 // pred_check
      _
    $region39: #{tpu_custom_call.1} parent=1 // pred_check_branch
      %106 = sbr.rel (0) target = $region41
    $region40: #{tpu_custom_call.1} parent=1 // pred_region
      %107 = dma.done [#allocation6], 256
    $region41: #{tpu_custom_call.1} parent=1 // pred_fallthru
      _
    // Predicated region
    $region42: #{tpu_custom_call.1} parent=1 // pred_check
      _
    $region43: #{tpu_custom_call.1} parent=1 // pred_check_branch
      %109 = sbr.rel (0) target = $region45
    $region44: #{tpu_custom_call.1} parent=1 // pred_region
      %110 = dma.done [#allocation6], 128
    $region45: #{tpu_custom_call.1} parent=1 // pred_fallthru
      _
    // Predicated region
    $region46: #{tpu_custom_call.1} parent=1 // pred_check
      _
    $region47: #{tpu_custom_call.1} parent=1 // pred_check_branch
      %112 = sbr.rel (0) target = $region49
    $region48: #{tpu_custom_call.1} parent=1 // pred_region
      %113 = dma.done [#allocation9], 256
    $region49: #{tpu_custom_call.1} parent=1 // pred_fallthru
      _
    // Predicated region
    $region50: #{tpu_custom_call.1} parent=1 // pred_check
      _
    $region51: #{tpu_custom_call.1} parent=1 // pred_check_branch
      %115 = sbr.rel (0) target = $region53
    $region52: #{tpu_custom_call.1} parent=1 // pred_region
      %116 = dma.done [#allocation9], 512
    $region53: #{tpu_custom_call.1} parent=1 // pred_fallthru
      _
    // Predicated region
    $region54: #{tpu_custom_call.1} parent=1 // pred_check
      _
    $region55: #{tpu_custom_call.1} parent=1 // pred_check_branch
      %118 = sbr.rel (0) target = $region57
    $region56: #{tpu_custom_call.1} parent=1 // pred_region
      %119 = dma.done [#allocation12], 2048
    $region57: #{tpu_custom_call.1} parent=1 // pred_fallthru
      _
    // Predicated region
    $region58: #{tpu_custom_call.1} parent=1 // pred_check
      _
    $region59: #{tpu_custom_call.1} parent=1 // pred_check_branch
      %121 = sbr.rel (0) target = $region61
    $region60: #{tpu_custom_call.1} parent=1 // pred_region
      %122 = dma.done [#allocation12], 2048
    $region61: #{tpu_custom_call.1} parent=1 // pred_fallthru
      _
    %v124 = vld [vmem:[#allocation2] sm:$0xf]
    %v125 = vld [vmem:[#allocation2 + $0x4] sm:$0xf]
    %v126 = vld [vmem:[#allocation2 + $0x8] sm:$0xf]
    %v127 = vld [vmem:[#allocation2 + $0xc] sm:$0xf]
    %v128 = vld [vmem:[#allocation7] sm:$0xf]
    %v129 = vld [vmem:[#allocation7 + $0x4] sm:$0xf]
    %v134 = vunpack.c.l.b16 %v124
    %v135 = vunpack.c.l.b16 %v125
    %v136 = vunpack.c.l.b16 %v126
    %v137 = vunpack.c.l.b16 %v127
    %v138 = vpack.c.b16 %v135, %v134
    %v139 = vpack.c.b16 %v137, %v136
    %v142 = vunpack.c.l.b16 %v128
    %v143 = vunpack.c.l.b16 %v129
    %v144 = vpack.c.b16 %v143, %v142
    %vm146 = vcmask 130048
    %v148 = vsel %vm146, %v138, 0
    %v151 = vsel %vm146, %v139, 0
    %153 = vmatprep.subr.bf16.mxu0 0
    %154 = vmatpush1.bf16.msra.mxu0 %v144
    %155 = vmatprep.subr.bf16.mxu0 0
    %156 = vmatpush1.bf16.msra.mxu0 0
    %157 = vmatprep.subr.bf16.mxu0 0
    %158 = vmatpush1.bf16.msra.mxu0 0
    %159 = vmatprep.subr.bf16.mxu0 0
    %160 = vmatpush1.bf16.msra.mxu0 0
    %161 = vmatprep.subr.bf16.mxu0 0
    %162 = vmatpush1.bf16.msra.mxu0 0
    %163 = vmatprep.subr.bf16.mxu0 0
    %164 = vmatpush1.bf16.msra.mxu0 0
    %165 = vmatprep.subr.bf16.mxu0 0
    %166 = vmatpush1.bf16.msra.mxu0 0
    %167 = vmatprep.subr.bf16.mxu0 0
    %168 = vmatpush1.bf16.msra.mxu0 0
    %169 = vmatprep.subr.bf16.mxu0 0
    %170 = vmatpush1.bf16.msra.mxu0 0
    %171 = vmatprep.subr.bf16.mxu0 0
    %172 = vmatpush1.bf16.msra.mxu0 0
    %173 = vmatprep.subr.bf16.mxu0 0
    %174 = vmatpush1.bf16.msra.mxu0 0
    %175 = vmatprep.subr.bf16.mxu0 0
    %176 = vmatpush1.bf16.msra.mxu0 0
    %177 = vmatprep.subr.bf16.mxu0 0
    %178 = vmatpush1.bf16.msra.mxu0 0
    %179 = vmatprep.subr.bf16.mxu0 0
    %180 = vmatpush1.bf16.msra.mxu0 0
    %181 = vmatprep.subr.bf16.mxu0 0
    %182 = vmatpush1.bf16.msra.mxu0 0
    %183 = vmatprep.subr.bf16.mxu0 0
    %184 = vmatpush1.bf16.msra.mxu0 0
    %185 = vmatprep.mubr.bf16.mxu0 0
    %186 = vmatmul.mubr.bf16.gmra.mrb[0].mxu0 %v148
    %v187 = vpop.f32.mrb[0].mxu0
    %v188 = vadd.f32 0.0, %v187
    %v189 = vpop.f32.mrb[0].mxu0
    %v190 = vpop.f32.mrb[0].mxu0
    %v191 = vadd.f32 0.0, %v190
    %v192 = vpop.f32.mrb[0].mxu0
    %193 = vmatprep.mubr.bf16.mxu0 0
    %194 = vmatmul.mubr.bf16.gmra.mrb[0].mxu0 %v151
    %v195 = vpop.f32.mrb[0].mxu0
    %v196 = vadd.f32 0.0, %v195
    %v197 = vpop.f32.mrb[0].mxu0
    %v198 = vpop.f32.mrb[0].mxu0
    %v199 = vadd.f32 0.0, %v198
    %v200 = vpop.f32.mrb[0].mxu0
    %201 = vdwg.mxu0
    %vm202 = vcmask 261120
    %v203 = vsel %vm202, %v188, 0.0
    %v204 = vrot.slane %v203, 4
    %v205 = vadd.f32 %v203, %v204
    %v206 = vrot.slane %v205, 2
    %v207 = vadd.f32 %v205, %v206
    %v208 = vrot.slane %v207, 1
    %v209 = vadd.f32 %v207, %v208
    %v210 = vsel %vm202, %v191, 0.0
    %v211 = vrot.slane %v210, 4
    %v212 = vadd.f32 %v210, %v211
    %v213 = vrot.slane %v212, 2
    %v214 = vadd.f32 %v212, %v213
    %v215 = vrot.slane %v214, 1
    %v216 = vadd.f32 %v214, %v215
    %v217 = vsel %vm202, %v196, 0.0
    %v218 = vrot.slane %v217, 4
    %v219 = vadd.f32 %v217, %v218
    %v220 = vrot.slane %v219, 2
    %v221 = vadd.f32 %v219, %v220
    %v222 = vrot.slane %v221, 1
    %v223 = vadd.f32 %v221, %v222
    %v224 = vsel %vm202, %v199, 0.0
    %v225 = vrot.slane %v224, 4
    %v226 = vadd.f32 %v224, %v225
    %v227 = vrot.slane %v226, 2
    %v228 = vadd.f32 %v226, %v227
    %v229 = vrot.slane %v228, 1
    %v230 = vadd.f32 %v228, %v229
    %v231 = vrcp.pop 8.0
    %v232 = vmul.f32 %v209, %v231
    %v233 = vmul.f32 %v216, %v231
    %v234 = vmul.f32 %v223, %v231
    %v235 = vmul.f32 %v230, %v231
    %v236 = vmul.f32 %v188, %v188
    %v237 = vmul.f32 %v191, %v191
    %v238 = vmul.f32 %v196, %v196
    %v239 = vmul.f32 %v199, %v199
    %v240 = vsel %vm202, %v236, 0.0
    %v241 = vrot.slane %v240, 4
    %v242 = vadd.f32 %v240, %v241
    %v243 = vrot.slane %v242, 2
    %v244 = vadd.f32 %v242, %v243
    %v245 = vrot.slane %v244, 1
    %v246 = vadd.f32 %v244, %v245
    %v247 = vsel %vm202, %v237, 0.0
    %v248 = vrot.slane %v247, 4
    %v249 = vadd.f32 %v247, %v248
    %v250 = vrot.slane %v249, 2
    %v251 = vadd.f32 %v249, %v250
    %v252 = vrot.slane %v251, 1
    %v253 = vadd.f32 %v251, %v252
    %v254 = vsel %vm202, %v238, 0.0
    %v255 = vrot.slane %v254, 4
    %v256 = vadd.f32 %v254, %v255
    %v257 = vrot.slane %v256, 2
    %v258 = vadd.f32 %v256, %v257
    %v259 = vrot.slane %v258, 1
    %v260 = vadd.f32 %v258, %v259
    %v261 = vsel %vm202, %v239, 0.0
    %v262 = vrot.slane %v261, 4
    %v263 = vadd.f32 %v261, %v262
    %v264 = vrot.slane %v263, 2
    %v265 = vadd.f32 %v263, %v264
    %v266 = vrot.slane %v265, 1
    %v267 = vadd.f32 %v265, %v266
    %v268 = vmul.f32 %v246, %v231
    %v269 = vmul.f32 %v253, %v231
    %v270 = vmul.f32 %v260, %v231
    %v271 = vmul.f32 %v267, %v231
    %v272 = vmul.f32 %v232, %v232
    %v273 = vmul.f32 %v233, %v233
    %v274 = vmul.f32 %v234, %v234
    %v275 = vmul.f32 %v235, %v235
    %v276 = vsub.f32 %v268, %v272
    %v277 = vsub.f32 %v269, %v273
    %v278 = vsub.f32 %v270, %v274
    %v279 = vsub.f32 %v271, %v275
    %v280 = vmax.f32 %v276, 0.0
    %v281 = vmax.f32 %v277, 0.0
    %v282 = vmax.f32 %v278, 0.0
    %v283 = vmax.f32 %v279, 0.0
    %v284 = vld [vmem:[#allocation5] ss:$0 sm:$0xff]
    %v285 = vld [vmem:[#allocation5 + $0x1] ss:$0 sm:$0xff]
    %v286 = vadd.f32 %v280, 1e-05
    %v287 = vadd.f32 %v281, 1e-05
    %v288 = vadd.f32 %v282, 1e-05
    %v289 = vadd.f32 %v283, 1e-05
    %v290 = vrsqrt.pop %v286
    %v291 = vrsqrt.pop %v287
    %v292 = vrsqrt.pop %v288
    %v293 = vrsqrt.pop %v289
    %v294 = vmul.f32 %v284, %v290
    %v295 = vmul.f32 %v284, %v291
    %v296 = vmul.f32 %v284, %v292
    %v297 = vmul.f32 %v284, %v293
    %v298 = vmul.f32 %v232, %v294
    %v299 = vmul.f32 %v233, %v295
    %v300 = vmul.f32 %v234, %v296
    %v301 = vmul.f32 %v235, %v297
    %v302 = vsub.f32 %v285, %v298
    %v303 = vsub.f32 %v285, %v299
    %v304 = vsub.f32 %v285, %v300
    %v305 = vsub.f32 %v285, %v301
    %v306 = vmul.f32 %v188, %v294
    %v307 = vmul.f32 %v191, %v295
    %v308 = vmul.f32 %v196, %v296
    %v309 = vmul.f32 %v199, %v297
    %v310 = vadd.f32 %v306, %v302
    %v311 = vadd.f32 %v307, %v303
    %v312 = vadd.f32 %v308, %v304
    %v313 = vadd.f32 %v309, %v305
    %v314 = vmax.f32 %v310, 0.0
    %v315 = vmax.f32 %v311, 0.0
    %v316 = vmax.f32 %v312, 0.0
    %v317 = vmax.f32 %v313, 0.0
    %v318 = vpack.c.bf16 %v315, %v314
    %v319 = vpack.c.bf16 %v317, %v316
    %v320 = vld [vmem:[#allocation8] sm:$0xf]
    %v321 = vld [vmem:[#allocation8 + $0x4] sm:$0xf]
    %v322 = vld [vmem:[#allocation8 + $0x8] sm:$0xf]
    %v323 = vld [vmem:[#allocation8 + $0xc] sm:$0xf]
    %v328 = vunpack.c.l.b16 %v320
    %v329 = vunpack.c.l.b16 %v321
    %v330 = vunpack.c.l.b16 %v322
    %v331 = vunpack.c.l.b16 %v323
    %v332 = vpack.c.b16 %v329, %v328
    %v333 = vpack.c.b16 %v331, %v330
    %v337 = vsel %vm202, %v318, 0
    %v340 = vsel %vm202, %v319, 0
    %342 = vmatprep.subr.bf16.mxu0 0
    %343 = vmatpush1.bf16.msra.mxu0 %v332
    %344 = vmatprep.subr.bf16.mxu0 0
    %345 = vmatpush1.bf16.msra.mxu0 %v333
    %346 = vmatprep.subr.bf16.mxu0 0
    %347 = vmatpush1.bf16.msra.mxu0 0
    %348 = vmatprep.subr.bf16.mxu0 0
    %349 = vmatpush1.bf16.msra.mxu0 0
    %350 = vmatprep.subr.bf16.mxu0 0
    %351 = vmatpush1.bf16.msra.mxu0 0
    %352 = vmatprep.subr.bf16.mxu0 0
    %353 = vmatpush1.bf16.msra.mxu0 0
    %354 = vmatprep.subr.bf16.mxu0 0
    %355 = vmatpush1.bf16.msra.mxu0 0
    %356 = vmatprep.subr.bf16.mxu0 0
    %357 = vmatpush1.bf16.msra.mxu0 0
    %358 = vmatprep.subr.bf16.mxu0 0
    %359 = vmatpush1.bf16.msra.mxu0 0
    %360 = vmatprep.subr.bf16.mxu0 0
    %361 = vmatpush1.bf16.msra.mxu0 0
    %362 = vmatprep.subr.bf16.mxu0 0
    %363 = vmatpush1.bf16.msra.mxu0 0
    %364 = vmatprep.subr.bf16.mxu0 0
    %365 = vmatpush1.bf16.msra.mxu0 0
    %366 = vmatprep.subr.bf16.mxu0 0
    %367 = vmatpush1.bf16.msra.mxu0 0
    %368 = vmatprep.subr.bf16.mxu0 0
    %369 = vmatpush1.bf16.msra.mxu0 0
    %370 = vmatprep.subr.bf16.mxu0 0
    %371 = vmatpush1.bf16.msra.mxu0 0
    %372 = vmatprep.subr.bf16.mxu0 0
    %373 = vmatpush1.bf16.msra.mxu0 0
    %374 = vmatprep.mubr.bf16.mxu0 0
    %375 = vmatmul.mubr.bf16.gmra.mrb[0].mxu0 %v337
    %v376 = vpop.f32.mrb[0].mxu0
    %v377 = vadd.f32 0.0, %v376
    %v378 = vpop.f32.mrb[0].mxu0
    %v379 = vpop.f32.mrb[0].mxu0
    %v380 = vadd.f32 0.0, %v379
    %v381 = vpop.f32.mrb[0].mxu0
    %382 = vmatprep.mubr.bf16.mxu0 0
    %383 = vmatmul.mubr.bf16.gmra.mrb[0].mxu0 %v340
    %v384 = vpop.f32.mrb[0].mxu0
    %v385 = vadd.f32 0.0, %v384
    %v386 = vpop.f32.mrb[0].mxu0
    %v387 = vpop.f32.mrb[0].mxu0
    %v388 = vadd.f32 0.0, %v387
    %v389 = vpop.f32.mrb[0].mxu0
    %390 = vdwg.mxu0
    %vm391 = vcmask 523264
    %v392 = vsel %vm391, %v377, 0.0
    %v393 = vrot.slane %v392, 4
    %v394 = vadd.f32 %v392, %v393
    %v395 = vrot.slane %v394, 2
    %v396 = vadd.f32 %v394, %v395
    %v397 = vrot.slane %v396, 1
    %v398 = vadd.f32 %v396, %v397
    %v399 = vsel %vm391, %v380, 0.0
    %v400 = vrot.slane %v399, 4
    %v401 = vadd.f32 %v399, %v400
    %v402 = vrot.slane %v401, 2
    %v403 = vadd.f32 %v401, %v402
    %v404 = vrot.slane %v403, 1
    %v405 = vadd.f32 %v403, %v404
    %v406 = vsel %vm391, %v385, 0.0
    %v407 = vrot.slane %v406, 4
    %v408 = vadd.f32 %v406, %v407
    %v409 = vrot.slane %v408, 2
    %v410 = vadd.f32 %v408, %v409
    %v411 = vrot.slane %v410, 1
    %v412 = vadd.f32 %v410, %v411
    %v413 = vsel %vm391, %v388, 0.0
    %v414 = vrot.slane %v413, 4
    %v415 = vadd.f32 %v413, %v414
    %v416 = vrot.slane %v415, 2
    %v417 = vadd.f32 %v415, %v416
    %v418 = vrot.slane %v417, 1
    %v419 = vadd.f32 %v417, %v418
    %v420 = vmul.f32 %v398, %v231
    %v421 = vmul.f32 %v405, %v231
    %v422 = vmul.f32 %v412, %v231
    %v423 = vmul.f32 %v419, %v231
    %v424 = vmul.f32 %v377, %v377
    %v425 = vmul.f32 %v380, %v380
    %v426 = vmul.f32 %v385, %v385
    %v427 = vmul.f32 %v388, %v388
    %v428 = vsel %vm391, %v424, 0.0
    %v429 = vrot.slane %v428, 4
    %v430 = vadd.f32 %v428, %v429
    %v431 = vrot.slane %v430, 2
    %v432 = vadd.f32 %v430, %v431
    %v433 = vrot.slane %v432, 1
    %v434 = vadd.f32 %v432, %v433
    %v435 = vsel %vm391, %v425, 0.0
    %v436 = vrot.slane %v435, 4
    %v437 = vadd.f32 %v435, %v436
    %v438 = vrot.slane %v437, 2
    %v439 = vadd.f32 %v437, %v438
    %v440 = vrot.slane %v439, 1
    %v441 = vadd.f32 %v439, %v440
    %v442 = vsel %vm391, %v426, 0.0
    %v443 = vrot.slane %v442, 4
    %v444 = vadd.f32 %v442, %v443
    %v445 = vrot.slane %v444, 2
    %v446 = vadd.f32 %v444, %v445
    %v447 = vrot.slane %v446, 1
    %v448 = vadd.f32 %v446, %v447
    %v449 = vsel %vm391, %v427, 0.0
    %v450 = vrot.slane %v449, 4
    %v451 = vadd.f32 %v449, %v450
    %v452 = vrot.slane %v451, 2
    %v453 = vadd.f32 %v451, %v452
    %v454 = vrot.slane %v453, 1
    %v455 = vadd.f32 %v453, %v454
    %v456 = vmul.f32 %v434, %v231
    %v457 = vmul.f32 %v441, %v231
    %v458 = vmul.f32 %v448, %v231
    %v459 = vmul.f32 %v455, %v231
    %v460 = vmul.f32 %v420, %v420
    %v461 = vmul.f32 %v421, %v421
    %v462 = vmul.f32 %v422, %v422
    %v463 = vmul.f32 %v423, %v423
    %v464 = vsub.f32 %v456, %v460
    %v465 = vsub.f32 %v457, %v461
    %v466 = vsub.f32 %v458, %v462
    %v467 = vsub.f32 %v459, %v463
    %v468 = vmax.f32 %v464, 0.0
    %v469 = vmax.f32 %v465, 0.0
    %v470 = vmax.f32 %v466, 0.0
    %v471 = vmax.f32 %v467, 0.0
    %v472 = vld [vmem:[#allocation5 + $0x2] ss:$0 sm:$0xff]
    %v473 = vld [vmem:[#allocation5 + $0x3] ss:$0 sm:$0xff]
    %v474 = vadd.f32 %v468, 1e-05
    %v475 = vadd.f32 %v469, 1e-05
    %v476 = vadd.f32 %v470, 1e-05
    %v477 = vadd.f32 %v471, 1e-05
    %v478 = vrsqrt.pop %v474
    %v479 = vrsqrt.pop %v475
    %v480 = vrsqrt.pop %v476
    %v481 = vrsqrt.pop %v477
    %v482 = vmul.f32 %v472, %v478
    %v483 = vmul.f32 %v472, %v479
    %v484 = vmul.f32 %v472, %v480
    %v485 = vmul.f32 %v472, %v481
    %v486 = vmul.f32 %v420, %v482
    %v487 = vmul.f32 %v421, %v483
    %v488 = vmul.f32 %v422, %v484
    %v489 = vmul.f32 %v423, %v485
    %v490 = vsub.f32 %v473, %v486
    %v491 = vsub.f32 %v473, %v487
    %v492 = vsub.f32 %v473, %v488
    %v493 = vsub.f32 %v473, %v489
    %v494 = vmul.f32 %v377, %v482
    %v495 = vmul.f32 %v380, %v483
    %v496 = vmul.f32 %v385, %v484
    %v497 = vmul.f32 %v388, %v485
    %v498 = vadd.f32 %v494, %v490
    %v499 = vadd.f32 %v495, %v491
    %v500 = vadd.f32 %v496, %v492
    %v501 = vadd.f32 %v497, %v493
    %v502 = vmax.f32 %v498, 0.0
    %v503 = vmax.f32 %v499, 0.0
    %v504 = vmax.f32 %v500, 0.0
    %v505 = vmax.f32 %v501, 0.0
    %v506 = vpack.c.bf16 %v503, %v502
    %v507 = vpack.c.bf16 %v505, %v504
    %v508 = vld [vmem:[#allocation10] sm:$0xf]
    %v509 = vld [vmem:[#allocation10 + $0x4] sm:$0xf]
    %v510 = vld [vmem:[#allocation10 + $0x8] sm:$0xf]
    %v511 = vld [vmem:[#allocation10 + $0xc] sm:$0xf]
    %v512 = vld [vmem:[#allocation10 + $0x10] sm:$0xf]
    %v513 = vld [vmem:[#allocation10 + $0x14] sm:$0xf]
    %v514 = vld [vmem:[#allocation10 + $0x18] sm:$0xf]
    %v515 = vld [vmem:[#allocation10 + $0x1c] sm:$0xf]
    %v524 = vunpack.c.l.b16 %v508
    %v525 = vunpack.c.l.b16 %v509
    %v526 = vunpack.c.l.b16 %v510
    %v527 = vunpack.c.l.b16 %v511
    %v528 = vunpack.c.l.b16 %v512
    %v529 = vunpack.c.l.b16 %v513
    %v530 = vunpack.c.l.b16 %v514
    %v531 = vunpack.c.l.b16 %v515
    %v532 = vpack.c.b16 %v525, %v524
    %v533 = vpack.c.b16 %v527, %v526
    %v534 = vpack.c.b16 %v529, %v528
    %v535 = vpack.c.b16 %v531, %v530
    %v541 = vsel %vm391, %v506, 0
    %v544 = vsel %vm391, %v507, 0
    %546 = vmatprep.subr.bf16.mxu0 0
    %547 = vmatpush1.bf16.msra.mxu0 %v532
    %548 = vmatprep.subr.bf16.mxu0 0
    %549 = vmatpush1.bf16.msra.mxu0 %v533
    %550 = vmatprep.subr.bf16.mxu0 0
    %551 = vmatpush1.bf16.msra.mxu0 %v534
    %552 = vmatprep.subr.bf16.mxu0 0
    %553 = vmatpush1.bf16.msra.mxu0 %v535
    %554 = vmatprep.subr.bf16.mxu0 0
    %555 = vmatpush1.bf16.msra.mxu0 0
    %556 = vmatprep.subr.bf16.mxu0 0
    %557 = vmatpush1.bf16.msra.mxu0 0
    %558 = vmatprep.subr.bf16.mxu0 0
    %559 = vmatpush1.bf16.msra.mxu0 0
    %560 = vmatprep.subr.bf16.mxu0 0
    %561 = vmatpush1.bf16.msra.mxu0 0
    %562 = vmatprep.subr.bf16.mxu0 0
    %563 = vmatpush1.bf16.msra.mxu0 0
    %564 = vmatprep.subr.bf16.mxu0 0
    %565 = vmatpush1.bf16.msra.mxu0 0
    %566 = vmatprep.subr.bf16.mxu0 0
    %567 = vmatpush1.bf16.msra.mxu0 0
    %568 = vmatprep.subr.bf16.mxu0 0
    %569 = vmatpush1.bf16.msra.mxu0 0
    %570 = vmatprep.subr.bf16.mxu0 0
    %571 = vmatpush1.bf16.msra.mxu0 0
    %572 = vmatprep.subr.bf16.mxu0 0
    %573 = vmatpush1.bf16.msra.mxu0 0
    %574 = vmatprep.subr.bf16.mxu0 0
    %575 = vmatpush1.bf16.msra.mxu0 0
    %576 = vmatprep.subr.bf16.mxu0 0
    %577 = vmatpush1.bf16.msra.mxu0 0
    %578 = vmatprep.mubr.bf16.mxu0 0
    %579 = vmatmul.mubr.bf16.gmra.mrb[0].mxu0 %v541
    %v580 = vpop.f32.mrb[0].mxu0
    %v581 = vadd.f32 0.0, %v580
    %v582 = vpop.f32.mrb[0].mxu0
    %v583 = vpop.f32.mrb[0].mxu0
    %v584 = vadd.f32 0.0, %v583
    %v585 = vpop.f32.mrb[0].mxu0
    %586 = vmatprep.mubr.bf16.mxu0 0
    %587 = vmatmul.mubr.bf16.gmra.mrb[0].mxu0 %v544
    %v588 = vpop.f32.mrb[0].mxu0
    %v589 = vadd.f32 0.0, %v588
    %v590 = vpop.f32.mrb[0].mxu0
    %v591 = vpop.f32.mrb[0].mxu0
    %v592 = vadd.f32 0.0, %v591
    %v593 = vpop.f32.mrb[0].mxu0
    %594 = vdwg.mxu0
    %v595 = vrot.slane %v581, 4
    %v596 = vadd.f32 %v581, %v595
    %v597 = vrot.slane %v596, 2
    %v598 = vadd.f32 %v596, %v597
    %v599 = vrot.slane %v598, 1
    %v600 = vadd.f32 %v598, %v599
    %v601 = vrot.slane %v584, 4
    %v602 = vadd.f32 %v584, %v601
    %v603 = vrot.slane %v602, 2
    %v604 = vadd.f32 %v602, %v603
    %v605 = vrot.slane %v604, 1
    %v606 = vadd.f32 %v604, %v605
    %v607 = vrot.slane %v589, 4
    %v608 = vadd.f32 %v589, %v607
    %v609 = vrot.slane %v608, 2
    %v610 = vadd.f32 %v608, %v609
    %v611 = vrot.slane %v610, 1
    %v612 = vadd.f32 %v610, %v611
    %v613 = vrot.slane %v592, 4
    %v614 = vadd.f32 %v592, %v613
    %v615 = vrot.slane %v614, 2
    %v616 = vadd.f32 %v614, %v615
    %v617 = vrot.slane %v616, 1
    %v618 = vadd.f32 %v616, %v617
    %v619 = vmul.f32 %v600, %v231
    %v620 = vmul.f32 %v606, %v231
    %v621 = vmul.f32 %v612, %v231
    %v622 = vmul.f32 %v618, %v231
    %v623 = vmul.f32 %v581, %v581
    %v624 = vmul.f32 %v584, %v584
    %v625 = vmul.f32 %v589, %v589
    %v626 = vmul.f32 %v592, %v592
    %v627 = vrot.slane %v623, 4
    %v628 = vadd.f32 %v623, %v627
    %v629 = vrot.slane %v628, 2
    %v630 = vadd.f32 %v628, %v629
    %v631 = vrot.slane %v630, 1
    %v632 = vadd.f32 %v630, %v631
    %v633 = vrot.slane %v624, 4
    %v634 = vadd.f32 %v624, %v633
    %v635 = vrot.slane %v634, 2
    %v636 = vadd.f32 %v634, %v635
    %v637 = vrot.slane %v636, 1
    %v638 = vadd.f32 %v636, %v637
    %v639 = vrot.slane %v625, 4
    %v640 = vadd.f32 %v625, %v639
    %v641 = vrot.slane %v640, 2
    %v642 = vadd.f32 %v640, %v641
    %v643 = vrot.slane %v642, 1
    %v644 = vadd.f32 %v642, %v643
    %v645 = vrot.slane %v626, 4
    %v646 = vadd.f32 %v626, %v645
    %v647 = vrot.slane %v646, 2
    %v648 = vadd.f32 %v646, %v647
    %v649 = vrot.slane %v648, 1
    %v650 = vadd.f32 %v648, %v649
    %v651 = vmul.f32 %v632, %v231
    %v652 = vmul.f32 %v638, %v231
    %v653 = vmul.f32 %v644, %v231
    %v654 = vmul.f32 %v650, %v231
    %v655 = vmul.f32 %v619, %v619
    %v656 = vmul.f32 %v620, %v620
    %v657 = vmul.f32 %v621, %v621
    %v658 = vmul.f32 %v622, %v622
    %v659 = vsub.f32 %v651, %v655
    %v660 = vsub.f32 %v652, %v656
    %v661 = vsub.f32 %v653, %v657
    %v662 = vsub.f32 %v654, %v658
    %v663 = vmax.f32 %v659, 0.0
    %v664 = vmax.f32 %v660, 0.0
    %v665 = vmax.f32 %v661, 0.0
    %v666 = vmax.f32 %v662, 0.0
    %v667 = vld [vmem:[#allocation5 + $0x4] ss:$0 sm:$0xff]
    %v668 = vld [vmem:[#allocation5 + $0x5] ss:$0 sm:$0xff]
    %v669 = vadd.f32 %v663, 1e-05
    %v670 = vadd.f32 %v664, 1e-05
    %v671 = vadd.f32 %v665, 1e-05
    %v672 = vadd.f32 %v666, 1e-05
    %v673 = vrsqrt.pop %v669
    %v674 = vrsqrt.pop %v670
    %v675 = vrsqrt.pop %v671
    %v676 = vrsqrt.pop %v672
    %v677 = vmul.f32 %v667, %v673
    %v678 = vmul.f32 %v667, %v674
    %v679 = vmul.f32 %v667, %v675
    %v680 = vmul.f32 %v667, %v676
    %v681 = vmul.f32 %v619, %v677
    %v682 = vmul.f32 %v620, %v678
    %v683 = vmul.f32 %v621, %v679
    %v684 = vmul.f32 %v622, %v680
    %v685 = vsub.f32 %v668, %v681
    %v686 = vsub.f32 %v668, %v682
    %v687 = vsub.f32 %v668, %v683
    %v688 = vsub.f32 %v668, %v684
    %v689 = vmul.f32 %v581, %v677
    %v690 = vmul.f32 %v584, %v678
    %v691 = vmul.f32 %v589, %v679
    %v692 = vmul.f32 %v592, %v680
    %v693 = vadd.f32 %v689, %v685
    %v694 = vadd.f32 %v690, %v686
    %v695 = vadd.f32 %v691, %v687
    %v696 = vadd.f32 %v692, %v688
    %v697 = vmax.f32 %v693, 0.0
    %v698 = vmax.f32 %v694, 0.0
    %v699 = vmax.f32 %v695, 0.0
    %v700 = vmax.f32 %v696, 0.0
    %v701 = vpack.c.bf16 %v698, %v697
    %v702 = vpack.c.bf16 %v700, %v699
    %v703 = vld [vmem:[#allocation11] sm:$0xff]
    %v704 = vld [vmem:[#allocation11 + $0x8] sm:$0xff]
    %v705 = vld [vmem:[#allocation11 + $0x10] sm:$0xff]
    %v706 = vld [vmem:[#allocation11 + $0x18] sm:$0xff]
    %v707 = vld [vmem:[#allocation11 + $0x20] sm:$0xff]
    %v708 = vld [vmem:[#allocation11 + $0x28] sm:$0xff]
    %v709 = vld [vmem:[#allocation11 + $0x30] sm:$0xff]
    %v710 = vld [vmem:[#allocation11 + $0x38] sm:$0xff]
    %v711 = vld [vmem:[#allocation11 + $0x40] sm:$0xff]
    %v712 = vld [vmem:[#allocation11 + $0x48] sm:$0xff]
    %v713 = vld [vmem:[#allocation11 + $0x50] sm:$0xff]
    %v714 = vld [vmem:[#allocation11 + $0x58] sm:$0xff]
    %v715 = vld [vmem:[#allocation11 + $0x60] sm:$0xff]
    %v716 = vld [vmem:[#allocation11 + $0x68] sm:$0xff]
    %v717 = vld [vmem:[#allocation11 + $0x70] sm:$0xff]
    %v718 = vld [vmem:[#allocation11 + $0x78] sm:$0xff]
    %v735 = vunpack.c.l.b16 %v703
    %v736 = vunpack.c.h.b16 %v703
    %v737 = vunpack.c.l.b16 %v704
    %v738 = vunpack.c.h.b16 %v704
    %v739 = vunpack.c.l.b16 %v705
    %v740 = vunpack.c.h.b16 %v705
    %v741 = vunpack.c.l.b16 %v706
    %v742 = vunpack.c.h.b16 %v706
    %v743 = vunpack.c.l.b16 %v707
    %v744 = vunpack.c.h.b16 %v707
    %v745 = vunpack.c.l.b16 %v708
    %v746 = vunpack.c.h.b16 %v708
    %v747 = vunpack.c.l.b16 %v709
    %v748 = vunpack.c.h.b16 %v709
    %v749 = vunpack.c.l.b16 %v710
    %v750 = vunpack.c.h.b16 %v710
    %v751 = vunpack.c.l.b16 %v711
    %v752 = vunpack.c.h.b16 %v711
    %v753 = vunpack.c.l.b16 %v712
    %v754 = vunpack.c.h.b16 %v712
    %v755 = vunpack.c.l.b16 %v713
    %v756 = vunpack.c.h.b16 %v713
    %v757 = vunpack.c.l.b16 %v714
    %v758 = vunpack.c.h.b16 %v714
    %v759 = vunpack.c.l.b16 %v715
    %v760 = vunpack.c.h.b16 %v715
    %v761 = vunpack.c.l.b16 %v716
    %v762 = vunpack.c.h.b16 %v716
    %v763 = vunpack.c.l.b16 %v717
    %v764 = vunpack.c.h.b16 %v717
    %v765 = vunpack.c.l.b16 %v718
    %v766 = vunpack.c.h.b16 %v718
    %v767 = vpack.c.b16 %v737, %v735
    %v768 = vpack.c.b16 %v738, %v736
    %v769 = vpack.c.b16 %v741, %v739
    %v770 = vpack.c.b16 %v742, %v740
    %v771 = vpack.c.b16 %v745, %v743
    %v772 = vpack.c.b16 %v746, %v744
    %v773 = vpack.c.b16 %v749, %v747
    %v774 = vpack.c.b16 %v750, %v748
    %v775 = vpack.c.b16 %v753, %v751
    %v776 = vpack.c.b16 %v754, %v752
    %v777 = vpack.c.b16 %v757, %v755
    %v778 = vpack.c.b16 %v758, %v756
    %v779 = vpack.c.b16 %v761, %v759
    %v780 = vpack.c.b16 %v762, %v760
    %v781 = vpack.c.b16 %v765, %v763
    %v782 = vpack.c.b16 %v766, %v764
    %799 = vmatprep.subr.bf16.mxu0 %v768
    %800 = vmatpush1.bf16.msra.mxu0 %v767
    %801 = vmatprep.subr.bf16.mxu0 %v770
    %802 = vmatpush1.bf16.msra.mxu0 %v769
    %803 = vmatprep.subr.bf16.mxu0 %v772
    %804 = vmatpush1.bf16.msra.mxu0 %v771
    %805 = vmatprep.subr.bf16.mxu0 %v774
    %806 = vmatpush1.bf16.msra.mxu0 %v773
    %807 = vmatprep.subr.bf16.mxu0 %v776
    %808 = vmatpush1.bf16.msra.mxu0 %v775
    %809 = vmatprep.subr.bf16.mxu0 %v778
    %810 = vmatpush1.bf16.msra.mxu0 %v777
    %811 = vmatprep.subr.bf16.mxu0 %v780
    %812 = vmatpush1.bf16.msra.mxu0 %v779
    %813 = vmatprep.subr.bf16.mxu0 %v782
    %814 = vmatpush1.bf16.msra.mxu0 %v781
    %815 = vmatprep.subr.bf16.mxu0 0
    %816 = vmatpush1.bf16.msra.mxu0 0
    %817 = vmatprep.subr.bf16.mxu0 0
    %818 = vmatpush1.bf16.msra.mxu0 0
    %819 = vmatprep.subr.bf16.mxu0 0
    %820 = vmatpush1.bf16.msra.mxu0 0
    %821 = vmatprep.subr.bf16.mxu0 0
    %822 = vmatpush1.bf16.msra.mxu0 0
    %823 = vmatprep.subr.bf16.mxu0 0
    %824 = vmatpush1.bf16.msra.mxu0 0
    %825 = vmatprep.subr.bf16.mxu0 0
    %826 = vmatpush1.bf16.msra.mxu0 0
    %827 = vmatprep.subr.bf16.mxu0 0
    %828 = vmatpush1.bf16.msra.mxu0 0
    %829 = vmatprep.subr.bf16.mxu0 0
    %830 = vmatpush1.bf16.msra.mxu0 0
    %831 = vmatprep.mubr.bf16.mxu0 0
    %832 = vmatmul.mubr.bf16.gmra.mrb[0].mxu0 %v701
    %v833 = vpop.f32.mrb[0].mxu0
    %v834 = vadd.f32 0.0, %v833
    %v835 = vpop.f32.mrb[0].mxu0
    %v836 = vadd.f32 0.0, %v835
    %v837 = vpop.f32.mrb[0].mxu0
    %v838 = vadd.f32 0.0, %v837
    %v839 = vpop.f32.mrb[0].mxu0
    %v840 = vadd.f32 0.0, %v839
    %841 = vmatprep.mubr.bf16.mxu0 0
    %842 = vmatmul.mubr.bf16.gmra.mrb[0].mxu0 %v702
    %v843 = vpop.f32.mrb[0].mxu0
    %v844 = vadd.f32 0.0, %v843
    %v845 = vpop.f32.mrb[0].mxu0
    %v846 = vadd.f32 0.0, %v845
    %v847 = vpop.f32.mrb[0].mxu0
    %v848 = vadd.f32 0.0, %v847
    %v849 = vpop.f32.mrb[0].mxu0
    %v850 = vadd.f32 0.0, %v849
    %851 = vdwg.mxu0
    %v852 = vrot.slane %v834, 4
    %v853 = vadd.f32 %v834, %v852
    %v854 = vrot.slane %v853, 2
    %v855 = vadd.f32 %v853, %v854
    %v856 = vrot.slane %v855, 1
    %v857 = vadd.f32 %v855, %v856
    %v858 = vrot.slane %v836, 4
    %v859 = vadd.f32 %v836, %v858
    %v860 = vrot.slane %v859, 2
    %v861 = vadd.f32 %v859, %v860
    %v862 = vrot.slane %v861, 1
    %v863 = vadd.f32 %v861, %v862
    %v864 = vrot.slane %v838, 4
    %v865 = vadd.f32 %v838, %v864
    %v866 = vrot.slane %v865, 2
    %v867 = vadd.f32 %v865, %v866
    %v868 = vrot.slane %v867, 1
    %v869 = vadd.f32 %v867, %v868
    %v870 = vrot.slane %v840, 4
    %v871 = vadd.f32 %v840, %v870
    %v872 = vrot.slane %v871, 2
    %v873 = vadd.f32 %v871, %v872
    %v874 = vrot.slane %v873, 1
    %v875 = vadd.f32 %v873, %v874
    %v876 = vrot.slane %v844, 4
    %v877 = vadd.f32 %v844, %v876
    %v878 = vrot.slane %v877, 2
    %v879 = vadd.f32 %v877, %v878
    %v880 = vrot.slane %v879, 1
    %v881 = vadd.f32 %v879, %v880
    %v882 = vrot.slane %v846, 4
    %v883 = vadd.f32 %v846, %v882
    %v884 = vrot.slane %v883, 2
    %v885 = vadd.f32 %v883, %v884
    %v886 = vrot.slane %v885, 1
    %v887 = vadd.f32 %v885, %v886
    %v888 = vrot.slane %v848, 4
    %v889 = vadd.f32 %v848, %v888
    %v890 = vrot.slane %v889, 2
    %v891 = vadd.f32 %v889, %v890
    %v892 = vrot.slane %v891, 1
    %v893 = vadd.f32 %v891, %v892
    %v894 = vrot.slane %v850, 4
    %v895 = vadd.f32 %v850, %v894
    %v896 = vrot.slane %v895, 2
    %v897 = vadd.f32 %v895, %v896
    %v898 = vrot.slane %v897, 1
    %v899 = vadd.f32 %v897, %v898
    %v900 = vmul.f32 %v857, %v231
    %v901 = vmul.f32 %v863, %v231
    %v902 = vmul.f32 %v869, %v231
    %v903 = vmul.f32 %v875, %v231
    %v904 = vmul.f32 %v881, %v231
    %v905 = vmul.f32 %v887, %v231
    %v906 = vmul.f32 %v893, %v231
    %v907 = vmul.f32 %v899, %v231
    %v908 = vmul.f32 %v834, %v834
    %v909 = vmul.f32 %v836, %v836
    %v910 = vmul.f32 %v838, %v838
    %v911 = vmul.f32 %v840, %v840
    %v912 = vmul.f32 %v844, %v844
    %v913 = vmul.f32 %v846, %v846
    %v914 = vmul.f32 %v848, %v848
    %v915 = vmul.f32 %v850, %v850
    %v916 = vrot.slane %v908, 4
    %v917 = vadd.f32 %v908, %v916
    %v918 = vrot.slane %v917, 2
    %v919 = vadd.f32 %v917, %v918
    %v920 = vrot.slane %v919, 1
    %v921 = vadd.f32 %v919, %v920
    %v922 = vrot.slane %v909, 4
    %v923 = vadd.f32 %v909, %v922
    %v924 = vrot.slane %v923, 2
    %v925 = vadd.f32 %v923, %v924
    %v926 = vrot.slane %v925, 1
    %v927 = vadd.f32 %v925, %v926
    %v928 = vrot.slane %v910, 4
    %v929 = vadd.f32 %v910, %v928
    %v930 = vrot.slane %v929, 2
    %v931 = vadd.f32 %v929, %v930
    %v932 = vrot.slane %v931, 1
    %v933 = vadd.f32 %v931, %v932
    %v934 = vrot.slane %v911, 4
    %v935 = vadd.f32 %v911, %v934
    %v936 = vrot.slane %v935, 2
    %v937 = vadd.f32 %v935, %v936
    %v938 = vrot.slane %v937, 1
    %v939 = vadd.f32 %v937, %v938
    %v940 = vrot.slane %v912, 4
    %v941 = vadd.f32 %v912, %v940
    %v942 = vrot.slane %v941, 2
    %v943 = vadd.f32 %v941, %v942
    %v944 = vrot.slane %v943, 1
    %v945 = vadd.f32 %v943, %v944
    %v946 = vrot.slane %v913, 4
    %v947 = vadd.f32 %v913, %v946
    %v948 = vrot.slane %v947, 2
    %v949 = vadd.f32 %v947, %v948
    %v950 = vrot.slane %v949, 1
    %v951 = vadd.f32 %v949, %v950
    %v952 = vrot.slane %v914, 4
    %v953 = vadd.f32 %v914, %v952
    %v954 = vrot.slane %v953, 2
    %v955 = vadd.f32 %v953, %v954
    %v956 = vrot.slane %v955, 1
    %v957 = vadd.f32 %v955, %v956
    %v958 = vrot.slane %v915, 4
    %v959 = vadd.f32 %v915, %v958
    %v960 = vrot.slane %v959, 2
    %v961 = vadd.f32 %v959, %v960
    %v962 = vrot.slane %v961, 1
    %v963 = vadd.f32 %v961, %v962
    %v964 = vmul.f32 %v921, %v231
    %v965 = vmul.f32 %v927, %v231
    %v966 = vmul.f32 %v933, %v231
    %v967 = vmul.f32 %v939, %v231
    %v968 = vmul.f32 %v945, %v231
    %v969 = vmul.f32 %v951, %v231
    %v970 = vmul.f32 %v957, %v231
    %v971 = vmul.f32 %v963, %v231
    %v972 = vmul.f32 %v900, %v900
    %v973 = vmul.f32 %v901, %v901
    %v974 = vmul.f32 %v902, %v902
    %v975 = vmul.f32 %v903, %v903
    %v976 = vmul.f32 %v904, %v904
    %v977 = vmul.f32 %v905, %v905
    %v978 = vmul.f32 %v906, %v906
    %v979 = vmul.f32 %v907, %v907
    %v980 = vsub.f32 %v964, %v972
    %v981 = vsub.f32 %v965, %v973
    %v982 = vsub.f32 %v966, %v974
    %v983 = vsub.f32 %v967, %v975
    %v984 = vsub.f32 %v968, %v976
    %v985 = vsub.f32 %v969, %v977
    %v986 = vsub.f32 %v970, %v978
    %v987 = vsub.f32 %v971, %v979
    %v988 = vmax.f32 %v980, 0.0
    %v989 = vmax.f32 %v981, 0.0
    %v990 = vmax.f32 %v982, 0.0
    %v991 = vmax.f32 %v983, 0.0
    %v992 = vmax.f32 %v984, 0.0
    %v993 = vmax.f32 %v985, 0.0
    %v994 = vmax.f32 %v986, 0.0
    %v995 = vmax.f32 %v987, 0.0
    %s996 = scalar_lea.vmem [#allocation5], 6
    %v997 = vld [vmem:[%s996] ss:$8 sm:$0x3]
    %s998 = scalar_lea.vmem [#allocation5], 7
    %v999 = vld [vmem:[%s998] ss:$8 sm:$0x3]
    %v1000 = vadd.f32 %v988, 1e-05
    %v1001 = vadd.f32 %v989, 1e-05
    %v1002 = vadd.f32 %v990, 1e-05
    %v1003 = vadd.f32 %v991, 1e-05
    %v1004 = vadd.f32 %v992, 1e-05
    %v1005 = vadd.f32 %v993, 1e-05
    %v1006 = vadd.f32 %v994, 1e-05
    %v1007 = vadd.f32 %v995, 1e-05
    %v1008 = vrsqrt.pop %v1000
    %v1009 = vrsqrt.pop %v1001
    %v1010 = vrsqrt.pop %v1002
    %v1011 = vrsqrt.pop %v1003
    %v1012 = vrsqrt.pop %v1004
    %v1013 = vrsqrt.pop %v1005
    %v1014 = vrsqrt.pop %v1006
    %v1015 = vrsqrt.pop %v1007
    %v1024 = vcombine.low %v1008, %v1009
    %v1026 = vunpack.c.l.s4 1966171168
    %v1027 = vunpack.c.0.s8 %v1026
    %v1028 = vlaneseq
    %v1029 = vshrl.u32 %v1028, 7
    %v1030 = vsub.s32 %v1027, %v1029
    %v1031 = vrot.slane %v1024, %v1030
    %v1033 = vunpack.c.l.s4 1966171168
    %v1034 = vunpack.c.0.s8 %v1033
    %v1035 = vlaneseq
    %v1036 = vshrl.u32 %v1035, 7
    %v1037 = vsub.s32 %v1034, %v1036
    %v1038 = vrot.slane %v1031, %v1037
    %v1039 = vcombine.low %v1010, %v1011
    %v1041 = vunpack.c.l.s4 1966171168
    %v1042 = vunpack.c.0.s8 %v1041
    %v1043 = vlaneseq
    %v1044 = vshrl.u32 %v1043, 7
    %v1045 = vsub.s32 %v1042, %v1044
    %v1046 = vrot.slane %v1039, %v1045
    %v1048 = vunpack.c.l.s4 1966171168
    %v1049 = vunpack.c.0.s8 %v1048
    %v1050 = vlaneseq
    %v1051 = vshrl.u32 %v1050, 7
    %v1052 = vsub.s32 %v1049, %v1051
    %v1053 = vrot.slane %v1046, %v1052
    %v1054 = vcombine.low %v1012, %v1013
    %v1056 = vunpack.c.l.s4 1966171168
    %v1057 = vunpack.c.0.s8 %v1056
    %v1058 = vlaneseq
    %v1059 = vshrl.u32 %v1058, 7
    %v1060 = vsub.s32 %v1057, %v1059
    %v1061 = vrot.slane %v1054, %v1060
    %v1063 = vunpack.c.l.s4 1966171168
    %v1064 = vunpack.c.0.s8 %v1063
    %v1065 = vlaneseq
    %v1066 = vshrl.u32 %v1065, 7
    %v1067 = vsub.s32 %v1064, %v1066
    %v1068 = vrot.slane %v1061, %v1067
    %v1069 = vcombine.low %v1014, %v1015
    %v1071 = vunpack.c.l.s4 1966171168
    %v1072 = vunpack.c.0.s8 %v1071
    %v1073 = vlaneseq
    %v1074 = vshrl.u32 %v1073, 7
    %v1075 = vsub.s32 %v1072, %v1074
    %v1076 = vrot.slane %v1069, %v1075
    %v1078 = vunpack.c.l.s4 1966171168
    %v1079 = vunpack.c.0.s8 %v1078
    %v1080 = vlaneseq
    %v1081 = vshrl.u32 %v1080, 7
    %v1082 = vsub.s32 %v1079, %v1081
    %v1083 = vrot.slane %v1076, %v1082
    %v1088 = vmul.f32 %v997, %v1038
    %v1089 = vmul.f32 %v997, %v1053
    %v1090 = vmul.f32 %v997, %v1068
    %v1091 = vmul.f32 %v997, %v1083
    %v1096 = vlaneseq
    %v1097 = vshrl.u32 %v1096, 7
    %v1098 = vsub.s32 0, %v1097
    %v1099 = vrot.slane %v1088, %v1098
    %v1100 = vlaneseq
    %v1101 = vshrl.u32 %v1100, 7
    %v1102 = vsub.s32 1, %v1101
    %v1103 = vrot.slane %v1088, %v1102
    %v1104 = vlaneseq
    %v1105 = vshrl.u32 %v1104, 7
    %v1106 = vsub.s32 0, %v1105
    %v1107 = vrot.slane %v1089, %v1106
    %v1108 = vlaneseq
    %v1109 = vshrl.u32 %v1108, 7
    %v1110 = vsub.s32 1, %v1109
    %v1111 = vrot.slane %v1089, %v1110
    %v1112 = vlaneseq
    %v1113 = vshrl.u32 %v1112, 7
    %v1114 = vsub.s32 0, %v1113
    %v1115 = vrot.slane %v1090, %v1114
    %v1116 = vlaneseq
    %v1117 = vshrl.u32 %v1116, 7
    %v1118 = vsub.s32 1, %v1117
    %v1119 = vrot.slane %v1090, %v1118
    %v1120 = vlaneseq
    %v1121 = vshrl.u32 %v1120, 7
    %v1122 = vsub.s32 0, %v1121
    %v1123 = vrot.slane %v1091, %v1122
    %v1124 = vlaneseq
    %v1125 = vshrl.u32 %v1124, 7
    %v1126 = vsub.s32 1, %v1125
    %v1127 = vrot.slane %v1091, %v1126
    %v1136 = vmul.f32 %v900, %v1099
    %v1137 = vmul.f32 %v901, %v1103
    %v1138 = vmul.f32 %v902, %v1107
    %v1139 = vmul.f32 %v903, %v1111
    %v1140 = vmul.f32 %v904, %v1115
    %v1141 = vmul.f32 %v905, %v1119
    %v1142 = vmul.f32 %v906, %v1123
    %v1143 = vmul.f32 %v907, %v1127
    %v1152 = vcombine.low %v1136, %v1137
    %v1154 = vunpack.c.l.s4 1966171168
    %v1155 = vunpack.c.0.s8 %v1154
    %v1156 = vlaneseq
    %v1157 = vshrl.u32 %v1156, 7
    %v1158 = vsub.s32 %v1155, %v1157
    %v1159 = vrot.slane %v1152, %v1158
    %v1161 = vunpack.c.l.s4 1966171168
    %v1162 = vunpack.c.0.s8 %v1161
    %v1163 = vlaneseq
    %v1164 = vshrl.u32 %v1163, 7
    %v1165 = vsub.s32 %v1162, %v1164
    %v1166 = vrot.slane %v1159, %v1165
    %v1167 = vcombine.low %v1138, %v1139
    %v1169 = vunpack.c.l.s4 1966171168
    %v1170 = vunpack.c.0.s8 %v1169
    %v1171 = vlaneseq
    %v1172 = vshrl.u32 %v1171, 7
    %v1173 = vsub.s32 %v1170, %v1172
    %v1174 = vrot.slane %v1167, %v1173
    %v1176 = vunpack.c.l.s4 1966171168
    %v1177 = vunpack.c.0.s8 %v1176
    %v1178 = vlaneseq
    %v1179 = vshrl.u32 %v1178, 7
    %v1180 = vsub.s32 %v1177, %v1179
    %v1181 = vrot.slane %v1174, %v1180
    %v1182 = vcombine.low %v1140, %v1141
    %v1184 = vunpack.c.l.s4 1966171168
    %v1185 = vunpack.c.0.s8 %v1184
    %v1186 = vlaneseq
    %v1187 = vshrl.u32 %v1186, 7
    %v1188 = vsub.s32 %v1185, %v1187
    %v1189 = vrot.slane %v1182, %v1188
    %v1191 = vunpack.c.l.s4 1966171168
    %v1192 = vunpack.c.0.s8 %v1191
    %v1193 = vlaneseq
    %v1194 = vshrl.u32 %v1193, 7
    %v1195 = vsub.s32 %v1192, %v1194
    %v1196 = vrot.slane %v1189, %v1195
    %v1197 = vcombine.low %v1142, %v1143
    %v1199 = vunpack.c.l.s4 1966171168
    %v1200 = vunpack.c.0.s8 %v1199
    %v1201 = vlaneseq
    %v1202 = vshrl.u32 %v1201, 7
    %v1203 = vsub.s32 %v1200, %v1202
    %v1204 = vrot.slane %v1197, %v1203
    %v1206 = vunpack.c.l.s4 1966171168
    %v1207 = vunpack.c.0.s8 %v1206
    %v1208 = vlaneseq
    %v1209 = vshrl.u32 %v1208, 7
    %v1210 = vsub.s32 %v1207, %v1209
    %v1211 = vrot.slane %v1204, %v1210
    %v1216 = vsub.f32 %v999, %v1166
    %v1217 = vsub.f32 %v999, %v1181
    %v1218 = vsub.f32 %v999, %v1196
    %v1219 = vsub.f32 %v999, %v1211
    %v1220 = vmul.f32 %v834, %v1099
    %v1221 = vmul.f32 %v836, %v1103
    %v1222 = vmul.f32 %v838, %v1107
    %v1223 = vmul.f32 %v840, %v1111
    %v1224 = vmul.f32 %v844, %v1115
    %v1225 = vmul.f32 %v846, %v1119
    %v1226 = vmul.f32 %v848, %v1123
    %v1227 = vmul.f32 %v850, %v1127
    %v1232 = vlaneseq
    %v1233 = vshrl.u32 %v1232, 7
    %v1234 = vsub.s32 0, %v1233
    %v1235 = vrot.slane %v1216, %v1234
    %v1236 = vlaneseq
    %v1237 = vshrl.u32 %v1236, 7
    %v1238 = vsub.s32 1, %v1237
    %v1239 = vrot.slane %v1216, %v1238
    %v1240 = vlaneseq
    %v1241 = vshrl.u32 %v1240, 7
    %v1242 = vsub.s32 0, %v1241
    %v1243 = vrot.slane %v1217, %v1242
    %v1244 = vlaneseq
    %v1245 = vshrl.u32 %v1244, 7
    %v1246 = vsub.s32 1, %v1245
    %v1247 = vrot.slane %v1217, %v1246
    %v1248 = vlaneseq
    %v1249 = vshrl.u32 %v1248, 7
    %v1250 = vsub.s32 0, %v1249
    %v1251 = vrot.slane %v1218, %v1250
    %v1252 = vlaneseq
    %v1253 = vshrl.u32 %v1252, 7
    %v1254 = vsub.s32 1, %v1253
    %v1255 = vrot.slane %v1218, %v1254
    %v1256 = vlaneseq
    %v1257 = vshrl.u32 %v1256, 7
    %v1258 = vsub.s32 0, %v1257
    %v1259 = vrot.slane %v1219, %v1258
    %v1260 = vlaneseq
    %v1261 = vshrl.u32 %v1260, 7
    %v1262 = vsub.s32 1, %v1261
    %v1263 = vrot.slane %v1219, %v1262
    %v1272 = vadd.f32 %v1220, %v1235
    %v1273 = vadd.f32 %v1221, %v1239
    %v1274 = vadd.f32 %v1222, %v1243
    %v1275 = vadd.f32 %v1223, %v1247
    %v1276 = vadd.f32 %v1224, %v1251
    %v1277 = vadd.f32 %v1225, %v1255
    %v1278 = vadd.f32 %v1226, %v1259
    %v1279 = vadd.f32 %v1227, %v1263
    %v1280 = vmax.f32 %v1272, 0.0
    %v1281 = vmax.f32 %v1273, 0.0
    %v1282 = vmax.f32 %v1274, 0.0
    %v1283 = vmax.f32 %v1275, 0.0
    %v1284 = vmax.f32 %v1276, 0.0
    %v1285 = vmax.f32 %v1277, 0.0
    %v1286 = vmax.f32 %v1278, 0.0
    %v1287 = vmax.f32 %v1279, 0.0
    %v1288 = vpack.c.bf16 %v1282, %v1280
    %v1289 = vpack.c.bf16 %v1283, %v1281
    %v1290 = vpack.c.bf16 %v1286, %v1284
    %v1291 = vpack.c.bf16 %v1287, %v1285
    %v1292 = vld [vmem:[#allocation13] sm:$0xf]
    %v1293 = vld [vmem:[#allocation13 + $0x4] sm:$0xf]
    %v1294 = vld [vmem:[#allocation13 + $0x8] sm:$0xf]
    %v1295 = vld [vmem:[#allocation13 + $0xc] sm:$0xf]
    %v1296 = vld [vmem:[#allocation13 + $0x10] sm:$0xf]
    %v1297 = vld [vmem:[#allocation13 + $0x14] sm:$0xf]
    %v1298 = vld [vmem:[#allocation13 + $0x18] sm:$0xf]
    %v1299 = vld [vmem:[#allocation13 + $0x1c] sm:$0xf]
    %v1300 = vld [vmem:[#allocation13 + $0x20] sm:$0xf]
    %v1301 = vld [vmem:[#allocation13 + $0x24] sm:$0xf]
    %v1302 = vld [vmem:[#allocation13 + $0x28] sm:$0xf]
    %v1303 = vld [vmem:[#allocation13 + $0x2c] sm:$0xf]
    %v1304 = vld [vmem:[#allocation13 + $0x30] sm:$0xf]
    %v1305 = vld [vmem:[#allocation13 + $0x34] sm:$0xf]
    %v1306 = vld [vmem:[#allocation13 + $0x38] sm:$0xf]
    %v1307 = vld [vmem:[#allocation13 + $0x3c] sm:$0xf]
    %v1308 = vld [vmem:[#allocation13 + $0x40] sm:$0xf]
    %v1309 = vld [vmem:[#allocation13 + $0x44] sm:$0xf]
    %v1310 = vld [vmem:[#allocation13 + $0x48] sm:$0xf]
    %v1311 = vld [vmem:[#allocation13 + $0x4c] sm:$0xf]
    %v1312 = vld [vmem:[#allocation13 + $0x50] sm:$0xf]
    %v1313 = vld [vmem:[#allocation13 + $0x54] sm:$0xf]
    %v1314 = vld [vmem:[#allocation13 + $0x58] sm:$0xf]
    %v1315 = vld [vmem:[#allocation13 + $0x5c] sm:$0xf]
    %v1316 = vld [vmem:[#allocation13 + $0x60] sm:$0xf]
    %v1317 = vld [vmem:[#allocation13 + $0x64] sm:$0xf]
    %v1318 = vld [vmem:[#allocation13 + $0x68] sm:$0xf]
    %v1319 = vld [vmem:[#allocation13 + $0x6c] sm:$0xf]
    %v1320 = vld [vmem:[#allocation13 + $0x70] sm:$0xf]
    %v1321 = vld [vmem:[#allocation13 + $0x74] sm:$0xf]
    %v1322 = vld [vmem:[#allocation13 + $0x78] sm:$0xf]
    %v1323 = vld [vmem:[#allocation13 + $0x7c] sm:$0xf]
    %v1324 = vld [vmem:[%s7] sm:$0x1]
    %v1326 = vlaneseq
    %v1327 = vshrl.u32 %v1326, 7
    %v1328 = vsub.s32 0, %v1327
    %v1329 = vrot.slane %v1324, %v1328
    %v1363 = vunpack.c.l.b16 %v1292
    %v1364 = vunpack.c.l.b16 %v1293
    %v1365 = vunpack.c.l.b16 %v1294
    %v1366 = vunpack.c.l.b16 %v1295
    %v1367 = vunpack.c.l.b16 %v1296
    %v1368 = vunpack.c.l.b16 %v1297
    %v1369 = vunpack.c.l.b16 %v1298
    %v1370 = vunpack.c.l.b16 %v1299
    %v1371 = vunpack.c.l.b16 %v1300
    %v1372 = vunpack.c.l.b16 %v1301
    %v1373 = vunpack.c.l.b16 %v1302
    %v1374 = vunpack.c.l.b16 %v1303
    %v1375 = vunpack.c.l.b16 %v1304
    %v1376 = vunpack.c.l.b16 %v1305
    %v1377 = vunpack.c.l.b16 %v1306
    %v1378 = vunpack.c.l.b16 %v1307
    %v1379 = vunpack.c.l.b16 %v1308
    %v1380 = vunpack.c.l.b16 %v1309
    %v1381 = vunpack.c.l.b16 %v1310
    %v1382 = vunpack.c.l.b16 %v1311
    %v1383 = vunpack.c.l.b16 %v1312
    %v1384 = vunpack.c.l.b16 %v1313
    %v1385 = vunpack.c.l.b16 %v1314
    %v1386 = vunpack.c.l.b16 %v1315
    %v1387 = vunpack.c.l.b16 %v1316
    %v1388 = vunpack.c.l.b16 %v1317
    %v1389 = vunpack.c.l.b16 %v1318
    %v1390 = vunpack.c.l.b16 %v1319
    %v1391 = vunpack.c.l.b16 %v1320
    %v1392 = vunpack.c.l.b16 %v1321
    %v1393 = vunpack.c.l.b16 %v1322
    %v1394 = vunpack.c.l.b16 %v1323
    %v1395 = vpack.c.b16 %v1364, %v1363
    %v1396 = vpack.c.b16 %v1366, %v1365
    %v1397 = vpack.c.b16 %v1368, %v1367
    %v1398 = vpack.c.b16 %v1370, %v1369
    %v1399 = vpack.c.b16 %v1372, %v1371
    %v1400 = vpack.c.b16 %v1374, %v1373
    %v1401 = vpack.c.b16 %v1376, %v1375
    %v1402 = vpack.c.b16 %v1378, %v1377
    %v1403 = vpack.c.b16 %v1380, %v1379
    %v1404 = vpack.c.b16 %v1382, %v1381
    %v1405 = vpack.c.b16 %v1384, %v1383
    %v1406 = vpack.c.b16 %v1386, %v1385
    %v1407 = vpack.c.b16 %v1388, %v1387
    %v1408 = vpack.c.b16 %v1390, %v1389
    %v1409 = vpack.c.b16 %v1392, %v1391
    %v1410 = vpack.c.b16 %v1394, %v1393
    %1427 = vmatprep.subr.bf16.mxu0 0
    %1428 = vmatpush1.bf16.msra.mxu0 %v1395
    %1429 = vmatprep.subr.bf16.mxu0 0
    %1430 = vmatpush1.bf16.msra.mxu0 %v1396
    %1431 = vmatprep.subr.bf16.mxu0 0
    %1432 = vmatpush1.bf16.msra.mxu0 %v1397
    %1433 = vmatprep.subr.bf16.mxu0 0
    %1434 = vmatpush1.bf16.msra.mxu0 %v1398
    %1435 = vmatprep.subr.bf16.mxu0 0
    %1436 = vmatpush1.bf16.msra.mxu0 %v1399
    %1437 = vmatprep.subr.bf16.mxu0 0
    %1438 = vmatpush1.bf16.msra.mxu0 %v1400
    %1439 = vmatprep.subr.bf16.mxu0 0
    %1440 = vmatpush1.bf16.msra.mxu0 %v1401
    %1441 = vmatprep.subr.bf16.mxu0 0
    %1442 = vmatpush1.bf16.msra.mxu0 %v1402
    %1443 = vmatprep.subr.bf16.mxu0 0
    %1444 = vmatpush1.bf16.msra.mxu0 %v1403
    %1445 = vmatprep.subr.bf16.mxu0 0
    %1446 = vmatpush1.bf16.msra.mxu0 %v1404
    %1447 = vmatprep.subr.bf16.mxu0 0
    %1448 = vmatpush1.bf16.msra.mxu0 %v1405
    %1449 = vmatprep.subr.bf16.mxu0 0
    %1450 = vmatpush1.bf16.msra.mxu0 %v1406
    %1451 = vmatprep.subr.bf16.mxu0 0
    %1452 = vmatpush1.bf16.msra.mxu0 %v1407
    %1453 = vmatprep.subr.bf16.mxu0 0
    %1454 = vmatpush1.bf16.msra.mxu0 %v1408
    %1455 = vmatprep.subr.bf16.mxu0 0
    %1456 = vmatpush1.bf16.msra.mxu0 %v1409
    %1457 = vmatprep.subr.bf16.mxu0 0
    %1458 = vmatpush1.bf16.msra.mxu0 %v1410
    %1459 = vmatprep.mubr.bf16.mxu0 %v1289
    %1460 = vmatmul.mubr.bf16.gmra.mrb[0].mxu0 %v1288
    %v1461 = vpop.f32.mrb[0].mxu0
    %v1462 = vadd.f32 %v1329, %v1461
    %v1463 = vpop.f32.mrb[0].mxu0
    %v1464 = vpop.f32.mrb[0].mxu0
    %v1465 = vadd.f32 %v1329, %v1464
    %v1466 = vpop.f32.mrb[0].mxu0
    %1467 = vmatprep.mubr.bf16.mxu0 %v1291
    %1468 = vmatmul.mubr.bf16.gmra.mrb[0].mxu0 %v1290
    %v1469 = vpop.f32.mrb[0].mxu0
    %v1470 = vadd.f32 %v1329, %v1469
    %v1471 = vpop.f32.mrb[0].mxu0
    %v1472 = vpop.f32.mrb[0].mxu0
    %v1473 = vadd.f32 %v1329, %v1472
    %v1474 = vpop.f32.mrb[0].mxu0
    %1475 = vdwg.mxu0
    %v1476 = vxor.u32 %v1462, 2147483648
    %v1477 = vxor.u32 %v1465, 2147483648
    %v1478 = vxor.u32 %v1470, 2147483648
    %v1479 = vxor.u32 %v1473, 2147483648
    %v1480 = vmul.f32 %v1476, 1.442695
    %v1481 = vpow.pop %v1480
    %v1482 = vmul.f32 %v1477, 1.442695
    %v1483 = vpow.pop %v1482
    %v1484 = vmul.f32 %v1478, 1.442695
    %v1485 = vpow.pop %v1484
    %v1486 = vmul.f32 %v1479, 1.442695
    %v1487 = vpow.pop %v1486
    %v1488 = vadd.f32 %v1481, 1.0
    %v1489 = vadd.f32 %v1483, 1.0
    %v1490 = vadd.f32 %v1485, 1.0
    %v1491 = vadd.f32 %v1487, 1.0
    %v1492 = vrcp.pop %v1488
    %v1493 = vmul.f32 1.0, %v1492
    %v1494 = vrcp.pop %v1489
    %v1495 = vmul.f32 1.0, %v1494
    %v1496 = vrcp.pop %v1490
    %v1497 = vmul.f32 1.0, %v1496
    %v1498 = vrcp.pop %v1491
    %v1499 = vmul.f32 1.0, %v1498
    %v1500 = vpack.c.bf16 %v1493, %v1493
    %v1501 = vpack.c.bf16 %v1495, %v1495
    %v1502 = vpack.c.bf16 %v1497, %v1497
    %v1503 = vpack.c.bf16 %v1499, %v1499
    %1504 = vst [vmem:[#allocation14] sm:$0xf] %v1500
    %1505 = vst [vmem:[#allocation14 + $0x4] sm:$0xf] %v1501
    %1506 = vst [vmem:[#allocation14 + $0x8] sm:$0xf] %v1502
    %1507 = vst [vmem:[#allocation14 + $0xc] sm:$0xf] %v1503
    // Predicated region
    $region62: #{tpu_custom_call.1} parent=1 // pred_check
      _
    $region63: #{tpu_custom_call.1} parent=1 // pred_check_branch
      %1509 = sbr.rel (0) target = $region65
    $region64: #{tpu_custom_call.1} parent=1 // pred_region
      %s1511 = ssub.s32 256, 256
      %1512 = vsyncadd [#allocation4], %s1511
      %s1513 = sshll.u32 [#allocation14], 4
      %s1514 = int_to_ptr.vmem [resolvable:$true] %s1513
      %1519 = dma.vmem_to_hbm [thread:$0]  %s1514, 256, %s8, [#allocation4], 64, 64, 4
    $region65: #{tpu_custom_call.1} parent=1 // pred_fallthru
      _
    // Predicated region
    $region66: #{tpu_custom_call.1} parent=1 // pred_check
      _
    $region67: #{tpu_custom_call.1} parent=1 // pred_check_branch
      %1521 = sbr.rel (0) target = $region69
    $region68: #{tpu_custom_call.1} parent=1 // pred_region
      %1522 = dma.done [#allocation4], 256
    $region69: #{tpu_custom_call.1} parent=1 // pred_fallthru
      _
    %1523 = vsyncpa [#allocation3], 1
    %1524 = vsyncpa [#allocation6], 1
    %1525 = vsyncpa [#allocation9], 1
    %1526 = vsyncpa [#allocation12], 1
    %1527 = vsyncpa [#allocation4], 1

</llo_original>
